<compile_context>
chip_gen: v7x
topology: tpu7x:2x2x1
jax: 0.10.0
libtpu: 0.0.40
codegen_flags: <defaults>
</compile_context>

<pallas_src>
import functools

import jax
import jax.numpy as jnp
from jax.experimental import pallas as pl
from jax.experimental.pallas import tpu as pltpu


N_ACTIONS = 4
N_REASONS = 21
OUT_PAD = 128          # lane-dense HBM output width (>= N_ACTIONS + N_REASONS)


# ----------------------------------------------------------------------------
# Fused Pallas kernel: conv3x3 -> 1x1 conv -> GAP -> neck -> (action ++ reason)
# ----------------------------------------------------------------------------
def _fused_forward_kernel(x_ref, bbw_ref, bbb_ref, clsw_ref, clsb_ref,
                          neckw_ref, neckb_ref, headw_ref, headb_ref, o_ref,
                          *, H, W, Cin, Cb):
    # x_ref block: (1, H+2, (W+2)*Cin) -- one zero-padded sample, channels in lanes.
    xp = x_ref[0]                                            # (H+2, (W+2)*Cin)

    # --- backbone: 3x3 conv (pad already applied), 9 taps as MXU matmuls ---
    acc = jnp.zeros((H, W * Cb), dtype=jnp.float32)
    for t in range(9):                                       # static unroll
        dy, dx = t // 3, t % 3
        win = xp[dy:dy + H, dx * Cin:dx * Cin + W * Cin]     # (H, W*Cin)
        acc = acc + jnp.dot(win, bbw_ref[t],
                            preferred_element_type=jnp.float32)
    feat = jnp.maximum(acc + bbb_ref[...], 0.0)              # (H, W*Cb) = (16,128)

    # --- classifier: 1x1 conv + ReLU (block-diagonal weight keeps lanes dense)
    cls = jnp.maximum(
        jnp.dot(feat, clsw_ref[...], preferred_element_type=jnp.float32)
        + clsb_ref[...], 0.0)                                # (H, W*Cc) = (16,128)

    # --- classifier_neck: global-average-pool as an MXU dot with a ones row;
    #     channel fold + 1/(H*W) are pre-folded into neckw_ref.
    colsum = jnp.dot(jnp.ones((1, H), jnp.float32), cls,
                     preferred_element_type=jnp.float32)     # (1, W*Cc)
    neck = jnp.maximum(
        jnp.dot(colsum, neckw_ref[...], preferred_element_type=jnp.float32)
        + neckb_ref[...], 0.0)                               # (1, hidden)

    # --- fused heads (action ++ reason, zero-padded to 128 output lanes) ---
    y = jnp.dot(neck, headw_ref[...],
                preferred_element_type=jnp.float32) + headb_ref[...]
    o_ref[0] = y.astype(o_ref.dtype)                         # (1, OUT_PAD)


# ----------------------------------------------------------------------------
# Parameter construction & one-time layout transformation (plain JAX glue)
# ----------------------------------------------------------------------------
def init_params(key, cin=4, cb=8, cc=8, hidden=32,
                n_actions=N_ACTIONS, n_reasons=N_REASONS):
    ks = jax.random.split(key, 10)
    s = 0.1
    return {
        "bb_w": s * jax.random.normal(ks[0], (3, 3, cin, cb), jnp.float32),  # HWIO
        "bb_b": s * jax.random.normal(ks[1], (cb,), jnp.float32),
        "cls_w": s * jax.random.normal(ks[2], (cb, cc), jnp.float32),
        "cls_b": s * jax.random.normal(ks[3], (cc,), jnp.float32),
        "neck_w": s * jax.random.normal(ks[4], (cc, hidden), jnp.float32),
        "neck_b": s * jax.random.normal(ks[5], (hidden,), jnp.float32),
        "act_w": s * jax.random.normal(ks[6], (hidden, n_actions), jnp.float32),
        "act_b": s * jax.random.normal(ks[7], (n_actions,), jnp.float32),
        "rsn_w": s * jax.random.normal(ks[8], (hidden, n_reasons), jnp.float32),
        "rsn_b": s * jax.random.normal(ks[9], (n_reasons,), jnp.float32),
    }


def prepare_params(params, *, H, W):
    """One-time weight transformation into the fused kernel's lane-dense layout."""
    cin, cb = params["bb_w"].shape[2], params["bb_w"].shape[3]
    cc = params["cls_w"].shape[1]
    hidden = params["neck_w"].shape[1]
    eye_w = jnp.eye(W, dtype=jnp.float32)

    # Per-tap block-diagonal conv weights: (9, W*Cin, W*Cb)
    bb_w2 = jnp.stack([jnp.kron(eye_w, params["bb_w"][dy, dx])
                       for dy in range(3) for dx in range(3)], axis=0)
    bb_b2 = jnp.tile(params["bb_b"], W).reshape(1, W * cb)
    # 1x1 conv as block-diagonal matmul: (W*Cb, W*Cc)
    cls_w2 = jnp.kron(eye_w, params["cls_w"])
    cls_b2 = jnp.tile(params["cls_b"], W).reshape(1, W * cc)
    # GAP channel-fold and 1/(H*W) folded into the neck weight: (W*Cc, hidden)
    neck_w2 = jnp.tile(params["neck_w"], (W, 1)) / float(H * W)
    neck_b2 = params["neck_b"].reshape(1, hidden)
    # Merge both heads; zero-pad to a lane-dense 128-wide output.
    head_w = jnp.concatenate([params["act_w"], params["rsn_w"]], axis=1)
    head_b = jnp.concatenate([params["act_b"], params["rsn_b"]], axis=0)
    pad = OUT_PAD - head_w.shape[1]
    head_w2 = jnp.pad(head_w, ((0, 0), (0, pad)))
    head_b2 = jnp.pad(head_b, ((0, pad),)).reshape(1, OUT_PAD)

    return {"bb_w2": bb_w2, "bb_b2": bb_b2, "cls_w2": cls_w2, "cls_b2": cls_b2,
            "neck_w2": neck_w2, "neck_b2": neck_b2,
            "head_w2": head_w2, "head_b2": head_b2}


# ----------------------------------------------------------------------------
# Forward pass (single fused pallas_call)
# ----------------------------------------------------------------------------
@jax.jit
def deeplabv3_forward(kparams, x_nchw):
    """Mirrors DeepLabV3.forward: returns result['out'] = [y_action, y_reason]."""
    n, cin, h, w = x_nchw.shape
    x = jnp.transpose(x_nchw, (0, 2, 3, 1))                  # NCHW -> NHWC
    xp = jnp.pad(x, ((0, 0), (1, 1), (1, 1), (0, 0)))        # pad=1 for 3x3 conv
    xp2 = xp.reshape(n, h + 2, (w + 2) * cin)                # channels into lanes

    cb = kparams["bb_b2"].shape[1] // w
    cc = kparams["cls_b2"].shape[1] // w
    hidden = kparams["neck_b2"].shape[1]
    out_pad = kparams["head_b2"].shape[1]

    kernel = functools.partial(_fused_forward_kernel, H=h, W=w, Cin=cin, Cb=cb)
    out = pl.pallas_call(
        kernel,
        out_shape=jax.ShapeDtypeStruct((n, 1, out_pad), jnp.float32),
        grid=(n,),
        in_specs=[
            pl.BlockSpec((1, h + 2, (w + 2) * cin), lambda i: (i, 0, 0)),
            pl.BlockSpec((9, w * cin, w * cb), lambda i: (0, 0, 0)),
            pl.BlockSpec((1, w * cb), lambda i: (0, 0)),
            pl.BlockSpec((w * cb, w * cc), lambda i: (0, 0)),
            pl.BlockSpec((1, w * cc), lambda i: (0, 0)),
            pl.BlockSpec((w * cc, hidden), lambda i: (0, 0)),
            pl.BlockSpec((1, hidden), lambda i: (0, 0)),
            pl.BlockSpec((hidden, out_pad), lambda i: (0, 0)),
            pl.BlockSpec((1, out_pad), lambda i: (0, 0)),
        ],
        out_specs=pl.BlockSpec((1, 1, out_pad), lambda i: (i, 0, 0)),
        compiler_params=pltpu.CompilerParams(
            dimension_semantics=("parallel",)),
    )(xp2, kparams["bb_w2"], kparams["bb_b2"], kparams["cls_w2"],
      kparams["cls_b2"], kparams["neck_w2"], kparams["neck_b2"],
      kparams["head_w2"], kparams["head_b2"])

    out = out.reshape(n, out_pad)
    y_action = out[:, :N_ACTIONS]
    y_reason = out[:, N_ACTIONS:N_ACTIONS + N_REASONS]
    return [y_action, y_reason]


# ----------------------------------------------------------------------------
# Pure-JAX reference (for correctness check only)
# ----------------------------------------------------------------------------
def _reference_forward(params, x_nchw):
    with jax.default_matmul_precision("highest"):
        x = jnp.transpose(x_nchw, (0, 2, 3, 1))
        n, h, w, cin = x.shape
        xp = jnp.pad(x, ((0, 0), (1, 1), (1, 1), (0, 0)))
        cb = params["bb_w"].shape[3]
        feat = jnp.zeros((n, h, w, cb), jnp.float32)
        for dy in range(3):
            for dx in range(3):
                feat = feat + jnp.einsum("nhwc,cd->nhwd",
                                         xp[:, dy:dy + h, dx:dx + w, :],
                                         params["bb_w"][dy, dx])
        feat = jax.nn.relu(feat + params["bb_b"])
        cls = jax.nn.relu(jnp.einsum("nhwc,cd->nhwd", feat, params["cls_w"])
                          + params["cls_b"])
        pooled = jnp.mean(cls, axis=(1, 2))
        neck = jax.nn.relu(pooled @ params["neck_w"] + params["neck_b"])
        y1 = neck @ params["act_w"] + params["act_b"]
        y2 = neck @ params["rsn_w"] + params["rsn_b"]
        return y1, y2


if __name__ == "__main__":
    key = jax.random.PRNGKey(0)
    x = jax.random.normal(key, (2, 4, 16, 16), dtype=jnp.float32)  # NCHW input
    params = init_params(jax.random.PRNGKey(42))
    kparams = prepare_params(params, H=16, W=16)                   # one-time prep

    y_action, y_reason = deeplabv3_forward(kparams, x)
    jax.block_until_ready((y_action, y_reason))

    assert y_action.shape == (2, N_ACTIONS) and y_reason.shape == (2, N_REASONS)
    r_action, r_reason = _reference_forward(params, x)
    assert jnp.allclose(y_action, r_action, atol=5e-3, rtol=5e-3)
    assert jnp.allclose(y_reason, r_reason, atol=5e-3, rtol=5e-3)
    print("KERNEL_OK")
</pallas_src>

<mosaic_0001>
module attributes {stable_mosaic.version = 11 : i64} {
  func.func @_fused_forward_kernel(%arg0: i32, %arg1: memref<1x18x72xf32, #tpu.memory_space<vmem>>, %arg2: memref<9x64x128xf32, #tpu.memory_space<vmem>>, %arg3: memref<1x128xf32, #tpu.memory_space<vmem>>, %arg4: memref<128x128xf32, #tpu.memory_space<vmem>>, %arg5: memref<1x128xf32, #tpu.memory_space<vmem>>, %arg6: memref<128x32xf32, #tpu.memory_space<vmem>>, %arg7: memref<1x32xf32, #tpu.memory_space<vmem>>, %arg8: memref<32x128xf32, #tpu.memory_space<vmem>>, %arg9: memref<1x128xf32, #tpu.memory_space<vmem>>, %arg10: memref<1x1x128xf32, #tpu.memory_space<vmem>>) attributes {dimension_semantics = [#tpu.dimension_semantics<parallel>], iteration_bounds = array<i64: 2>, scalar_prefetch = 0 : i64, scratch_operands = 0 : i64, tpu.core_type = #tpu.core_type<tc>, window_params = [{transform_indices = @transform_0, window_bounds = array<i64: 1, 18, 72>}, {pipeline_mode = #tpu.pipeline_mode<synchronous>, transform_indices = @transform_1, window_bounds = array<i64: 9, 64, 128>}, {pipeline_mode = #tpu.pipeline_mode<synchronous>, transform_indices = @transform_2, window_bounds = array<i64: 1, 128>}, {pipeline_mode = #tpu.pipeline_mode<synchronous>, transform_indices = @transform_3, window_bounds = array<i64: 128, 128>}, {pipeline_mode = #tpu.pipeline_mode<synchronous>, transform_indices = @transform_4, window_bounds = array<i64: 1, 128>}, {pipeline_mode = #tpu.pipeline_mode<synchronous>, transform_indices = @transform_5, window_bounds = array<i64: 128, 32>}, {pipeline_mode = #tpu.pipeline_mode<synchronous>, transform_indices = @transform_6, window_bounds = array<i64: 1, 32>}, {pipeline_mode = #tpu.pipeline_mode<synchronous>, transform_indices = @transform_7, window_bounds = array<i64: 32, 128>}, {pipeline_mode = #tpu.pipeline_mode<synchronous>, transform_indices = @transform_8, window_bounds = array<i64: 1, 128>}, {transform_indices = @transform_9, window_bounds = array<i64: 1, 1, 128>}]} {
    %c0 = arith.constant 0 : index
    %c0_0 = arith.constant 0 : index
    %c0_1 = arith.constant 0 : index
    %0 = vector.load %arg1[%c0, %c0_0, %c0_1] : memref<1x18x72xf32, #tpu.memory_space<vmem>>, vector<1x18x72xf32>
    %1 = vector.shape_cast %0 : vector<1x18x72xf32> to vector<18x72xf32>
    %cst = arith.constant 0.000000e+00 : f32
    %2 = vector.broadcast %cst : f32 to vector<16x128xf32>
    %3 = vector.extract_strided_slice %1 {offsets = [0, 0], sizes = [16, 64], strides = [1, 1]} : vector<18x72xf32> to vector<16x64xf32>
    %c0_2 = arith.constant 0 : index
    %c0_3 = arith.constant 0 : index
    %c0_4 = arith.constant 0 : index
    %4 = vector.load %arg2[%c0_2, %c0_3, %c0_4] : memref<9x64x128xf32, #tpu.memory_space<vmem>>, vector<1x64x128xf32>
    %5 = vector.shape_cast %4 : vector<1x64x128xf32> to vector<64x128xf32>
    %cst_5 = arith.constant dense<0.000000e+00> : vector<16x128xf32>
    %6 = tpu.matmul %3, %5, %cst_5 {dimension_numbers = #tpu.dot_dimension_numbers<[1], [0], [0], [1], [0, 0, 1, 1], [], []>} : vector<16x64xf32>, vector<64x128xf32>, vector<16x128xf32> -> vector<16x128xf32>
    %7 = arith.addf %2, %6 : vector<16x128xf32>
    %8 = vector.extract_strided_slice %1 {offsets = [0, 4], sizes = [16, 64], strides = [1, 1]} : vector<18x72xf32> to vector<16x64xf32>
    %c1 = arith.constant 1 : index
    %c0_6 = arith.constant 0 : index
    %c0_7 = arith.constant 0 : index
    %9 = vector.load %arg2[%c1, %c0_6, %c0_7] : memref<9x64x128xf32, #tpu.memory_space<vmem>>, vector<1x64x128xf32>
    %10 = vector.shape_cast %9 : vector<1x64x128xf32> to vector<64x128xf32>
    %cst_8 = arith.constant dense<0.000000e+00> : vector<16x128xf32>
    %11 = tpu.matmul %8, %10, %cst_8 {dimension_numbers = #tpu.dot_dimension_numbers<[1], [0], [0], [1], [0, 0, 1, 1], [], []>} : vector<16x64xf32>, vector<64x128xf32>, vector<16x128xf32> -> vector<16x128xf32>
    %12 = arith.addf %7, %11 : vector<16x128xf32>
    %13 = vector.extract_strided_slice %1 {offsets = [0, 8], sizes = [16, 64], strides = [1, 1]} : vector<18x72xf32> to vector<16x64xf32>
    %c2 = arith.constant 2 : index
    %c0_9 = arith.constant 0 : index
    %c0_10 = arith.constant 0 : index
    %14 = vector.load %arg2[%c2, %c0_9, %c0_10] : memref<9x64x128xf32, #tpu.memory_space<vmem>>, vector<1x64x128xf32>
    %15 = vector.shape_cast %14 : vector<1x64x128xf32> to vector<64x128xf32>
    %cst_11 = arith.constant dense<0.000000e+00> : vector<16x128xf32>
    %16 = tpu.matmul %13, %15, %cst_11 {dimension_numbers = #tpu.dot_dimension_numbers<[1], [0], [0], [1], [0, 0, 1, 1], [], []>} : vector<16x64xf32>, vector<64x128xf32>, vector<16x128xf32> -> vector<16x128xf32>
    %17 = arith.addf %12, %16 : vector<16x128xf32>
    %18 = vector.extract_strided_slice %1 {offsets = [1, 0], sizes = [16, 64], strides = [1, 1]} : vector<18x72xf32> to vector<16x64xf32>
    %c3 = arith.constant 3 : index
    %c0_12 = arith.constant 0 : index
    %c0_13 = arith.constant 0 : index
    %19 = vector.load %arg2[%c3, %c0_12, %c0_13] : memref<9x64x128xf32, #tpu.memory_space<vmem>>, vector<1x64x128xf32>
    %20 = vector.shape_cast %19 : vector<1x64x128xf32> to vector<64x128xf32>
    %cst_14 = arith.constant dense<0.000000e+00> : vector<16x128xf32>
    %21 = tpu.matmul %18, %20, %cst_14 {dimension_numbers = #tpu.dot_dimension_numbers<[1], [0], [0], [1], [0, 0, 1, 1], [], []>} : vector<16x64xf32>, vector<64x128xf32>, vector<16x128xf32> -> vector<16x128xf32>
    %22 = arith.addf %17, %21 : vector<16x128xf32>
    %23 = vector.extract_strided_slice %1 {offsets = [1, 4], sizes = [16, 64], strides = [1, 1]} : vector<18x72xf32> to vector<16x64xf32>
    %c4 = arith.constant 4 : index
    %c0_15 = arith.constant 0 : index
    %c0_16 = arith.constant 0 : index
    %24 = vector.load %arg2[%c4, %c0_15, %c0_16] : memref<9x64x128xf32, #tpu.memory_space<vmem>>, vector<1x64x128xf32>
    %25 = vector.shape_cast %24 : vector<1x64x128xf32> to vector<64x128xf32>
    %cst_17 = arith.constant dense<0.000000e+00> : vector<16x128xf32>
    %26 = tpu.matmul %23, %25, %cst_17 {dimension_numbers = #tpu.dot_dimension_numbers<[1], [0], [0], [1], [0, 0, 1, 1], [], []>} : vector<16x64xf32>, vector<64x128xf32>, vector<16x128xf32> -> vector<16x128xf32>
    %27 = arith.addf %22, %26 : vector<16x128xf32>
    %28 = vector.extract_strided_slice %1 {offsets = [1, 8], sizes = [16, 64], strides = [1, 1]} : vector<18x72xf32> to vector<16x64xf32>
    %c5 = arith.constant 5 : index
    %c0_18 = arith.constant 0 : index
    %c0_19 = arith.constant 0 : index
    %29 = vector.load %arg2[%c5, %c0_18, %c0_19] : memref<9x64x128xf32, #tpu.memory_space<vmem>>, vector<1x64x128xf32>
    %30 = vector.shape_cast %29 : vector<1x64x128xf32> to vector<64x128xf32>
    %cst_20 = arith.constant dense<0.000000e+00> : vector<16x128xf32>
    %31 = tpu.matmul %28, %30, %cst_20 {dimension_numbers = #tpu.dot_dimension_numbers<[1], [0], [0], [1], [0, 0, 1, 1], [], []>} : vector<16x64xf32>, vector<64x128xf32>, vector<16x128xf32> -> vector<16x128xf32>
    %32 = arith.addf %27, %31 : vector<16x128xf32>
    %33 = vector.extract_strided_slice %1 {offsets = [2, 0], sizes = [16, 64], strides = [1, 1]} : vector<18x72xf32> to vector<16x64xf32>
    %c6 = arith.constant 6 : index
    %c0_21 = arith.constant 0 : index
    %c0_22 = arith.constant 0 : index
    %34 = vector.load %arg2[%c6, %c0_21, %c0_22] : memref<9x64x128xf32, #tpu.memory_space<vmem>>, vector<1x64x128xf32>
    %35 = vector.shape_cast %34 : vector<1x64x128xf32> to vector<64x128xf32>
    %cst_23 = arith.constant dense<0.000000e+00> : vector<16x128xf32>
    %36 = tpu.matmul %33, %35, %cst_23 {dimension_numbers = #tpu.dot_dimension_numbers<[1], [0], [0], [1], [0, 0, 1, 1], [], []>} : vector<16x64xf32>, vector<64x128xf32>, vector<16x128xf32> -> vector<16x128xf32>
    %37 = arith.addf %32, %36 : vector<16x128xf32>
    %38 = vector.extract_strided_slice %1 {offsets = [2, 4], sizes = [16, 64], strides = [1, 1]} : vector<18x72xf32> to vector<16x64xf32>
    %c7 = arith.constant 7 : index
    %c0_24 = arith.constant 0 : index
    %c0_25 = arith.constant 0 : index
    %39 = vector.load %arg2[%c7, %c0_24, %c0_25] : memref<9x64x128xf32, #tpu.memory_space<vmem>>, vector<1x64x128xf32>
    %40 = vector.shape_cast %39 : vector<1x64x128xf32> to vector<64x128xf32>
    %cst_26 = arith.constant dense<0.000000e+00> : vector<16x128xf32>
    %41 = tpu.matmul %38, %40, %cst_26 {dimension_numbers = #tpu.dot_dimension_numbers<[1], [0], [0], [1], [0, 0, 1, 1], [], []>} : vector<16x64xf32>, vector<64x128xf32>, vector<16x128xf32> -> vector<16x128xf32>
    %42 = arith.addf %37, %41 : vector<16x128xf32>
    %43 = vector.extract_strided_slice %1 {offsets = [2, 8], sizes = [16, 64], strides = [1, 1]} : vector<18x72xf32> to vector<16x64xf32>
    %c8 = arith.constant 8 : index
    %c0_27 = arith.constant 0 : index
    %c0_28 = arith.constant 0 : index
    %44 = vector.load %arg2[%c8, %c0_27, %c0_28] : memref<9x64x128xf32, #tpu.memory_space<vmem>>, vector<1x64x128xf32>
    %45 = vector.shape_cast %44 : vector<1x64x128xf32> to vector<64x128xf32>
    %cst_29 = arith.constant dense<0.000000e+00> : vector<16x128xf32>
    %46 = tpu.matmul %43, %45, %cst_29 {dimension_numbers = #tpu.dot_dimension_numbers<[1], [0], [0], [1], [0, 0, 1, 1], [], []>} : vector<16x64xf32>, vector<64x128xf32>, vector<16x128xf32> -> vector<16x128xf32>
    %47 = arith.addf %42, %46 : vector<16x128xf32>
    %c0_30 = arith.constant 0 : index
    %c0_31 = arith.constant 0 : index
    %48 = vector.load %arg3[%c0_30, %c0_31] : memref<1x128xf32, #tpu.memory_space<vmem>>, vector<1x128xf32>
    %49 = vector.broadcast %48 : vector<1x128xf32> to vector<16x128xf32>
    %50 = arith.addf %47, %49 : vector<16x128xf32>
    %cst_32 = arith.constant 0.000000e+00 : f32
    %51 = vector.broadcast %cst_32 : f32 to vector<16x128xf32>
    %52 = arith.maximumf %50, %51 : vector<16x128xf32>
    %c0_33 = arith.constant 0 : index
    %c0_34 = arith.constant 0 : index
    %53 = vector.load %arg4[%c0_33, %c0_34] : memref<128x128xf32, #tpu.memory_space<vmem>>, vector<128x128xf32>
    %cst_35 = arith.constant dense<0.000000e+00> : vector<16x128xf32>
    %54 = tpu.matmul %52, %53, %cst_35 {dimension_numbers = #tpu.dot_dimension_numbers<[1], [0], [0], [1], [0, 0, 1, 1], [], []>} : vector<16x128xf32>, vector<128x128xf32>, vector<16x128xf32> -> vector<16x128xf32>
    %c0_36 = arith.constant 0 : index
    %c0_37 = arith.constant 0 : index
    %55 = vector.load %arg5[%c0_36, %c0_37] : memref<1x128xf32, #tpu.memory_space<vmem>>, vector<1x128xf32>
    %56 = vector.broadcast %55 : vector<1x128xf32> to vector<16x128xf32>
    %57 = arith.addf %54, %56 : vector<16x128xf32>
    %cst_38 = arith.constant 0.000000e+00 : f32
    %58 = vector.broadcast %cst_38 : f32 to vector<16x128xf32>
    %59 = arith.maximumf %57, %58 : vector<16x128xf32>
    %cst_39 = arith.constant 1.000000e+00 : f32
    %60 = vector.broadcast %cst_39 : f32 to vector<1x16xf32>
    %cst_40 = arith.constant dense<0.000000e+00> : vector<1x128xf32>
    %61 = tpu.matmul %60, %59, %cst_40 {dimension_numbers = #tpu.dot_dimension_numbers<[1], [0], [0], [1], [0, 0, 1, 1], [], []>} : vector<1x16xf32>, vector<16x128xf32>, vector<1x128xf32> -> vector<1x128xf32>
    %c0_41 = arith.constant 0 : index
    %c0_42 = arith.constant 0 : index
    %62 = vector.load %arg6[%c0_41, %c0_42] : memref<128x32xf32, #tpu.memory_space<vmem>>, vector<128x32xf32>
    %cst_43 = arith.constant dense<0.000000e+00> : vector<1x32xf32>
    %63 = tpu.matmul %61, %62, %cst_43 {dimension_numbers = #tpu.dot_dimension_numbers<[1], [0], [0], [1], [0, 0, 1, 1], [], []>} : vector<1x128xf32>, vector<128x32xf32>, vector<1x32xf32> -> vector<1x32xf32>
    %c0_44 = arith.constant 0 : index
    %c0_45 = arith.constant 0 : index
    %64 = vector.load %arg7[%c0_44, %c0_45] : memref<1x32xf32, #tpu.memory_space<vmem>>, vector<1x32xf32>
    %65 = arith.addf %63, %64 : vector<1x32xf32>
    %cst_46 = arith.constant 0.000000e+00 : f32
    %66 = vector.broadcast %cst_46 : f32 to vector<1x32xf32>
    %67 = arith.maximumf %65, %66 : vector<1x32xf32>
    %c0_47 = arith.constant 0 : index
    %c0_48 = arith.constant 0 : index
    %68 = vector.load %arg8[%c0_47, %c0_48] : memref<32x128xf32, #tpu.memory_space<vmem>>, vector<32x128xf32>
    %cst_49 = arith.constant dense<0.000000e+00> : vector<1x128xf32>
    %69 = tpu.matmul %67, %68, %cst_49 {dimension_numbers = #tpu.dot_dimension_numbers<[1], [0], [0], [1], [0, 0, 1, 1], [], []>} : vector<1x32xf32>, vector<32x128xf32>, vector<1x128xf32> -> vector<1x128xf32>
    %c0_50 = arith.constant 0 : index
    %c0_51 = arith.constant 0 : index
    %70 = vector.load %arg9[%c0_50, %c0_51] : memref<1x128xf32, #tpu.memory_space<vmem>>, vector<1x128xf32>
    %71 = arith.addf %69, %70 : vector<1x128xf32>
    %c0_52 = arith.constant 0 : index
    %c0_53 = arith.constant 0 : index
    %c0_54 = arith.constant 0 : index
    %72 = vector.load %arg10[%c0_52, %c0_53, %c0_54] : memref<1x1x128xf32, #tpu.memory_space<vmem>>, vector<1x1x128xf32>
    %73 = vector.shape_cast %72 : vector<1x1x128xf32> to vector<1x128xf32>
    %74 = vector.shape_cast %71 : vector<1x128xf32> to vector<1x1x128xf32>
    tpu.vector_store %arg10[%c0_52, %c0_53, %c0_54], %74 {strides = array<i32>} : memref<1x1x128xf32, #tpu.memory_space<vmem>>, vector<1x1x128xf32>,
    return
  }
  func.func @transform_0(%arg0: i32) -> (i32, i32, i32) {
    %c0_i32 = arith.constant 0 : i32
    %c0_i32_0 = arith.constant 0 : i32
    %c0_i32_1 = arith.constant 0 : i32
    return %arg0, %c0_i32, %c0_i32_0 : i32, i32, i32
  }
  func.func @transform_1(%arg0: i32) -> (i32, i32, i32) {
    %c0_i32 = arith.constant 0 : i32
    %c0_i32_0 = arith.constant 0 : i32
    %c0_i32_1 = arith.constant 0 : i32
    %c0_i32_2 = arith.constant 0 : i32
    return %c0_i32, %c0_i32_0, %c0_i32_1 : i32, i32, i32
  }
  func.func @transform_2(%arg0: i32) -> (i32, i32) {
    %c0_i32 = arith.constant 0 : i32
    %c0_i32_0 = arith.constant 0 : i32
    %c0_i32_1 = arith.constant 0 : i32
    return %c0_i32, %c0_i32_0 : i32, i32
  }
  func.func @transform_3(%arg0: i32) -> (i32, i32) {
    %c0_i32 = arith.constant 0 : i32
    %c0_i32_0 = arith.constant 0 : i32
    %c0_i32_1 = arith.constant 0 : i32
    return %c0_i32, %c0_i32_0 : i32, i32
  }
  func.func @transform_4(%arg0: i32) -> (i32, i32) {
    %c0_i32 = arith.constant 0 : i32
    %c0_i32_0 = arith.constant 0 : i32
    %c0_i32_1 = arith.constant 0 : i32
    return %c0_i32, %c0_i32_0 : i32, i32
  }
  func.func @transform_5(%arg0: i32) -> (i32, i32) {
    %c0_i32 = arith.constant 0 : i32
    %c0_i32_0 = arith.constant 0 : i32
    %c0_i32_1 = arith.constant 0 : i32
    return %c0_i32, %c0_i32_0 : i32, i32
  }
  func.func @transform_6(%arg0: i32) -> (i32, i32) {
    %c0_i32 = arith.constant 0 : i32
    %c0_i32_0 = arith.constant 0 : i32
    %c0_i32_1 = arith.constant 0 : i32
    return %c0_i32, %c0_i32_0 : i32, i32
  }
  func.func @transform_7(%arg0: i32) -> (i32, i32) {
    %c0_i32 = arith.constant 0 : i32
    %c0_i32_0 = arith.constant 0 : i32
    %c0_i32_1 = arith.constant 0 : i32
    return %c0_i32, %c0_i32_0 : i32, i32
  }
  func.func @transform_8(%arg0: i32) -> (i32, i32) {
    %c0_i32 = arith.constant 0 : i32
    %c0_i32_0 = arith.constant 0 : i32
    %c0_i32_1 = arith.constant 0 : i32
    return %c0_i32, %c0_i32_0 : i32, i32
  }
  func.func @transform_9(%arg0: i32) -> (i32, i32, i32) {
    %c0_i32 = arith.constant 0 : i32
    %c0_i32_0 = arith.constant 0 : i32
    %c0_i32_1 = arith.constant 0 : i32
    return %arg0, %c0_i32, %c0_i32_0 : i32, i32, i32
  }
}

</mosaic_0001>

<llo_original>
// kernel: deeplabv3_forward.1
$region0: #{deeplabv3_forward.1}
  #allocation0 [shape = 'u32[]', space=smem, size = 0x4, offset = 0x4, fixed_abs, tag = 'smem constant byte address 0x4 - core index']
  #allocation1 [shape = 'u32[144,128]{1,0:T(1,128)}', space=vmem, size = 0x12000, scoped, tag = 'internal scratch']
  %s0 = inlined_call_operand.vmem [shape: f32[2,18,72], index: 0, kind: input, shape index: {}]
  %s1 = inlined_call_operand.vmem [shape: f32[9,64,128], index: 1, kind: input, shape index: {}]
  %s2 = inlined_call_operand.vmem [shape: f32[1,128], index: 2, kind: input, shape index: {}]
  %s3 = inlined_call_operand.vmem [shape: f32[128,128], index: 3, kind: input, shape index: {}]
  %s4 = inlined_call_operand.vmem [shape: f32[1,128], index: 4, kind: input, shape index: {}]
  %s5 = inlined_call_operand.vmem [shape: f32[128,32], index: 5, kind: input, shape index: {}]
  %s6 = inlined_call_operand.vmem [shape: f32[1,32], index: 6, kind: input, shape index: {}]
  %s7 = inlined_call_operand.vmem [shape: f32[32,128], index: 7, kind: input, shape index: {}]
  %s8 = inlined_call_operand.vmem [shape: f32[1,128], index: 8, kind: input, shape index: {}]
  %s9 = inlined_call_operand.vmem [shape: f32[2,1,128], index: 9, kind: output, shape index: {}]
  %s10 = sld [smem:[#allocation0]]
  $region69: #{deeplabv3_forward.1} parent=0
    _
  %s12 = ssub.s32 1, %s10
  %s13 = scalar_select 0, %s12, %s10
  loop: start=0, step=1, limit=4
  $region2: #{deeplabv3_forward.1} parent=0 // loop_pre_header
    _
  $region3: #{deeplabv3_forward.1} parent=0 // loop_header
    %s15 = sphi 0, %s19
    %p16 = scmp.ge.s32.totalorder %s15, 4
    %s25 = sphi 0, %s27
    %s28 = sphi 0, %s25
    %s29 = sphi 0, %s28
    %s45 = sphi 0, %s29
    %s49 = sphi 0, %s49
    %s51 = sphi 0, %s49
    %s52 = sphi 0, %s51
    %s66 = sphi 0, %s52
    %s70 = sphi 0, %s70
    %s72 = sphi 0, %s70
    %s73 = sphi 0, %s72
    %s87 = sphi 0, %s73
    %s91 = sphi 0, %s91
    %s93 = sphi 0, %s91
    %s94 = sphi 0, %s93
    %s108 = sphi 0, %s94
    %s112 = sphi 0, %s112
    %s114 = sphi 0, %s112
    %s115 = sphi 0, %s114
    %s129 = sphi 0, %s115
    %s133 = sphi 0, %s133
    %s135 = sphi 0, %s133
    %s136 = sphi 0, %s135
    %s150 = sphi 0, %s136
    %s154 = sphi 0, %s154
    %s156 = sphi 0, %s154
    %s157 = sphi 0, %s156
    %s171 = sphi 0, %s157
    %s175 = sphi 0, %s175
    %s177 = sphi 0, %s175
    %s178 = sphi 0, %s177
    %s192 = sphi 0, %s178
    %s196 = sphi 0, %s196
    %s198 = sphi 0, %s196
    %s199 = sphi 0, %s198
    %s213 = sphi 0, %s199
    %s219 = sphi 0, %s221
    %s222 = sphi 0, %s219
    %s223 = sphi 0, %s222
    %s239 = sphi 0, %s223
  $region4: #{deeplabv3_forward.1} parent=0 // loop_header_branch
    %18 = sbr.rel (%p16) target = $region8
  $region5: #{deeplabv3_forward.1} parent=0 // loop_body
    %s20 = ssub.s32 %s15, 1
    %s21 = ssub.s32 %s15, 2
    %s22 = sadd.s32 %s15, 1
    %s23 = ssub.s32 %s15, %s22
    %p24 = scmp.eq.s32.totalorder %s23, 0
    %s26 = sadd.s32 %s25, 1
    %s27 = scalar_select %p24, %s25, %s26
    %p30 = pneg %p24
    %p31 = scmp.eq.s32.totalorder %s15, 1
    %p32 = por %p30, %p31
    %p33 = scmp.ne.s32.totalorder %s25, %s28
    %p34 = scmp.eq.s32.totalorder %s15, 0
    %p35 = por %p33, %p34
    %p36 = scmp.ne.s32.totalorder %s25, %s28
    %p37 = scmp.eq.s32.totalorder %s20, 1
    %p38 = por %p36, %p37
    %p39 = scmp.ne.s32.totalorder %s28, %s29
    %p40 = scmp.eq.s32.totalorder %s20, 0
    %p41 = por %p39, %p40
    %p42 = scmp.ne.s32.totalorder %s28, %s29
    %p43 = scmp.eq.s32.totalorder %s21, 1
    %p44 = por %p42, %p43
    %p46 = scmp.ne.s32.totalorder %s29, %s45
    %p47 = scmp.eq.s32.totalorder %s21, 0
    %p48 = por %p46, %p47
    %s50 = sadd.s32 %s49, 1
    %p53 = scmp.eq.s32.totalorder %s15, 1
    %p54 = scmp.ne.s32.totalorder %s49, %s51
    %p55 = scmp.eq.s32.totalorder %s15, 0
    %p56 = por %p54, %p55
    %p57 = scmp.ne.s32.totalorder %s49, %s51
    %p58 = scmp.eq.s32.totalorder %s20, 1
    %p59 = por %p57, %p58
    %p60 = scmp.ne.s32.totalorder %s51, %s52
    %p61 = scmp.eq.s32.totalorder %s20, 0
    %p62 = por %p60, %p61
    %p63 = scmp.ne.s32.totalorder %s51, %s52
    %p64 = scmp.eq.s32.totalorder %s21, 1
    %p65 = por %p63, %p64
    %p67 = scmp.ne.s32.totalorder %s52, %s66
    %p68 = scmp.eq.s32.totalorder %s21, 0
    %p69 = por %p67, %p68
    %s71 = sadd.s32 %s70, 1
    %p74 = scmp.eq.s32.totalorder %s15, 1
    %p75 = scmp.ne.s32.totalorder %s70, %s72
    %p76 = scmp.eq.s32.totalorder %s15, 0
    %p77 = por %p75, %p76
    %p78 = scmp.ne.s32.totalorder %s70, %s72
    %p79 = scmp.eq.s32.totalorder %s20, 1
    %p80 = por %p78, %p79
    %p81 = scmp.ne.s32.totalorder %s72, %s73
    %p82 = scmp.eq.s32.totalorder %s20, 0
    %p83 = por %p81, %p82
    %p84 = scmp.ne.s32.totalorder %s72, %s73
    %p85 = scmp.eq.s32.totalorder %s21, 1
    %p86 = por %p84, %p85
    %p88 = scmp.ne.s32.totalorder %s73, %s87
    %p89 = scmp.eq.s32.totalorder %s21, 0
    %p90 = por %p88, %p89
    %s92 = sadd.s32 %s91, 1
    %p95 = scmp.eq.s32.totalorder %s15, 1
    %p96 = scmp.ne.s32.totalorder %s91, %s93
    %p97 = scmp.eq.s32.totalorder %s15, 0
    %p98 = por %p96, %p97
    %p99 = scmp.ne.s32.totalorder %s91, %s93
    %p100 = scmp.eq.s32.totalorder %s20, 1
    %p101 = por %p99, %p100
    %p102 = scmp.ne.s32.totalorder %s93, %s94
    %p103 = scmp.eq.s32.totalorder %s20, 0
    %p104 = por %p102, %p103
    %p105 = scmp.ne.s32.totalorder %s93, %s94
    %p106 = scmp.eq.s32.totalorder %s21, 1
    %p107 = por %p105, %p106
    %p109 = scmp.ne.s32.totalorder %s94, %s108
    %p110 = scmp.eq.s32.totalorder %s21, 0
    %p111 = por %p109, %p110
    %s113 = sadd.s32 %s112, 1
    %p116 = scmp.eq.s32.totalorder %s15, 1
    %p117 = scmp.ne.s32.totalorder %s112, %s114
    %p118 = scmp.eq.s32.totalorder %s15, 0
    %p119 = por %p117, %p118
    %p120 = scmp.ne.s32.totalorder %s112, %s114
    %p121 = scmp.eq.s32.totalorder %s20, 1
    %p122 = por %p120, %p121
    %p123 = scmp.ne.s32.totalorder %s114, %s115
    %p124 = scmp.eq.s32.totalorder %s20, 0
    %p125 = por %p123, %p124
    %p126 = scmp.ne.s32.totalorder %s114, %s115
    %p127 = scmp.eq.s32.totalorder %s21, 1
    %p128 = por %p126, %p127
    %p130 = scmp.ne.s32.totalorder %s115, %s129
    %p131 = scmp.eq.s32.totalorder %s21, 0
    %p132 = por %p130, %p131
    %s134 = sadd.s32 %s133, 1
    %p137 = scmp.eq.s32.totalorder %s15, 1
    %p138 = scmp.ne.s32.totalorder %s133, %s135
    %p139 = scmp.eq.s32.totalorder %s15, 0
    %p140 = por %p138, %p139
    %p141 = scmp.ne.s32.totalorder %s133, %s135
    %p142 = scmp.eq.s32.totalorder %s20, 1
    %p143 = por %p141, %p142
    %p144 = scmp.ne.s32.totalorder %s135, %s136
    %p145 = scmp.eq.s32.totalorder %s20, 0
    %p146 = por %p144, %p145
    %p147 = scmp.ne.s32.totalorder %s135, %s136
    %p148 = scmp.eq.s32.totalorder %s21, 1
    %p149 = por %p147, %p148
    %p151 = scmp.ne.s32.totalorder %s136, %s150
    %p152 = scmp.eq.s32.totalorder %s21, 0
    %p153 = por %p151, %p152
    %s155 = sadd.s32 %s154, 1
    %p158 = scmp.eq.s32.totalorder %s15, 1
    %p159 = scmp.ne.s32.totalorder %s154, %s156
    %p160 = scmp.eq.s32.totalorder %s15, 0
    %p161 = por %p159, %p160
    %p162 = scmp.ne.s32.totalorder %s154, %s156
    %p163 = scmp.eq.s32.totalorder %s20, 1
    %p164 = por %p162, %p163
    %p165 = scmp.ne.s32.totalorder %s156, %s157
    %p166 = scmp.eq.s32.totalorder %s20, 0
    %p167 = por %p165, %p166
    %p168 = scmp.ne.s32.totalorder %s156, %s157
    %p169 = scmp.eq.s32.totalorder %s21, 1
    %p170 = por %p168, %p169
    %p172 = scmp.ne.s32.totalorder %s157, %s171
    %p173 = scmp.eq.s32.totalorder %s21, 0
    %p174 = por %p172, %p173
    %s176 = sadd.s32 %s175, 1
    %p179 = scmp.eq.s32.totalorder %s15, 1
    %p180 = scmp.ne.s32.totalorder %s175, %s177
    %p181 = scmp.eq.s32.totalorder %s15, 0
    %p182 = por %p180, %p181
    %p183 = scmp.ne.s32.totalorder %s175, %s177
    %p184 = scmp.eq.s32.totalorder %s20, 1
    %p185 = por %p183, %p184
    %p186 = scmp.ne.s32.totalorder %s177, %s178
    %p187 = scmp.eq.s32.totalorder %s20, 0
    %p188 = por %p186, %p187
    %p189 = scmp.ne.s32.totalorder %s177, %s178
    %p190 = scmp.eq.s32.totalorder %s21, 1
    %p191 = por %p189, %p190
    %p193 = scmp.ne.s32.totalorder %s178, %s192
    %p194 = scmp.eq.s32.totalorder %s21, 0
    %p195 = por %p193, %p194
    %s197 = sadd.s32 %s196, 1
    %p200 = scmp.eq.s32.totalorder %s15, 1
    %p201 = scmp.ne.s32.totalorder %s196, %s198
    %p202 = scmp.eq.s32.totalorder %s15, 0
    %p203 = por %p201, %p202
    %p204 = scmp.ne.s32.totalorder %s196, %s198
    %p205 = scmp.eq.s32.totalorder %s20, 1
    %p206 = por %p204, %p205
    %p207 = scmp.ne.s32.totalorder %s198, %s199
    %p208 = scmp.eq.s32.totalorder %s20, 0
    %p209 = por %p207, %p208
    %p210 = scmp.ne.s32.totalorder %s198, %s199
    %p211 = scmp.eq.s32.totalorder %s21, 1
    %p212 = por %p210, %p211
    %p214 = scmp.ne.s32.totalorder %s199, %s213
    %p215 = scmp.eq.s32.totalorder %s21, 0
    %p216 = por %p214, %p215
    %s217 = ssub.s32 %s15, %s22
    %p218 = scmp.eq.s32.totalorder %s217, 0
    %s220 = sadd.s32 %s219, 1
    %s221 = scalar_select %p218, %s219, %s220
    %p224 = pneg %p218
    %p225 = scmp.eq.s32.totalorder %s15, 1
    %p226 = por %p224, %p225
    %p227 = scmp.ne.s32.totalorder %s219, %s222
    %p228 = scmp.eq.s32.totalorder %s15, 0
    %p229 = por %p227, %p228
    %p230 = scmp.ne.s32.totalorder %s219, %s222
    %p231 = scmp.eq.s32.totalorder %s20, 1
    %p232 = por %p230, %p231
    %p233 = scmp.ne.s32.totalorder %s222, %s223
    %p234 = scmp.eq.s32.totalorder %s20, 0
    %p235 = por %p233, %p234
    %p236 = scmp.ne.s32.totalorder %s222, %s223
    %p237 = scmp.eq.s32.totalorder %s21, 1
    %p238 = por %p236, %p237
    %p240 = scmp.ne.s32.totalorder %s223, %s239
    %p241 = scmp.eq.s32.totalorder %s21, 0
    %p242 = por %p240, %p241
    %p243 = scmp.le.s32.totalorder 1, %s15
    %p244 = scmp.lt.s32.totalorder %s15, 3
    %p245 = pnand %p243, %p244
    %p246 = pneg %p245
    // Predicated region
    $region9: #{deeplabv3_forward.1} parent=5 // pred_check
      _
    $region10: #{deeplabv3_forward.1} parent=5 // pred_check_branch
      %248 = sbr.rel (%p245) target = $region12
    $region11: #{deeplabv3_forward.1} parent=5 // pred_region
      %s249 = ssub.s32 %s15, 1
      // Predicated region
      $region13: #{deeplabv3_forward.1} parent=11 // pred_check
        %p250 = pneg %p62
      $region14: #{deeplabv3_forward.1} parent=11 // pred_check_branch
        %252 = sbr.rel (%p250) target = $region16
      $region15: #{deeplabv3_forward.1} parent=11 // pred_region
        _
      $region16: #{deeplabv3_forward.1} parent=11 // pred_fallthru
        _
      // Predicated region
      $region17: #{deeplabv3_forward.1} parent=11 // pred_check
        %p253 = pneg %p83
      $region18: #{deeplabv3_forward.1} parent=11 // pred_check_branch
        %255 = sbr.rel (%p253) target = $region20
      $region19: #{deeplabv3_forward.1} parent=11 // pred_region
        _
      $region20: #{deeplabv3_forward.1} parent=11 // pred_fallthru
        _
      // Predicated region
      $region21: #{deeplabv3_forward.1} parent=11 // pred_check
        %p256 = pneg %p104
      $region22: #{deeplabv3_forward.1} parent=11 // pred_check_branch
        %258 = sbr.rel (%p256) target = $region24
      $region23: #{deeplabv3_forward.1} parent=11 // pred_region
        _
      $region24: #{deeplabv3_forward.1} parent=11 // pred_fallthru
        _
      // Predicated region
      $region25: #{deeplabv3_forward.1} parent=11 // pred_check
        %p259 = pneg %p125
      $region26: #{deeplabv3_forward.1} parent=11 // pred_check_branch
        %261 = sbr.rel (%p259) target = $region28
      $region27: #{deeplabv3_forward.1} parent=11 // pred_region
        _
      $region28: #{deeplabv3_forward.1} parent=11 // pred_fallthru
        _
      // Predicated region
      $region29: #{deeplabv3_forward.1} parent=11 // pred_check
        %p262 = pneg %p146
      $region30: #{deeplabv3_forward.1} parent=11 // pred_check_branch
        %264 = sbr.rel (%p262) target = $region32
      $region31: #{deeplabv3_forward.1} parent=11 // pred_region
        _
      $region32: #{deeplabv3_forward.1} parent=11 // pred_fallthru
        _
      // Predicated region
      $region33: #{deeplabv3_forward.1} parent=11 // pred_check
        %p265 = pneg %p167
      $region34: #{deeplabv3_forward.1} parent=11 // pred_check_branch
        %267 = sbr.rel (%p265) target = $region36
      $region35: #{deeplabv3_forward.1} parent=11 // pred_region
        _
      $region36: #{deeplabv3_forward.1} parent=11 // pred_fallthru
        _
      // Predicated region
      $region37: #{deeplabv3_forward.1} parent=11 // pred_check
        %p268 = pneg %p188
      $region38: #{deeplabv3_forward.1} parent=11 // pred_check_branch
        %270 = sbr.rel (%p268) target = $region40
      $region39: #{deeplabv3_forward.1} parent=11 // pred_region
        _
      $region40: #{deeplabv3_forward.1} parent=11 // pred_fallthru
        _
      // Predicated region
      $region41: #{deeplabv3_forward.1} parent=11 // pred_check
        %p271 = pneg %p209
      $region42: #{deeplabv3_forward.1} parent=11 // pred_check_branch
        %273 = sbr.rel (%p271) target = $region44
      $region43: #{deeplabv3_forward.1} parent=11 // pred_region
        _
      $region44: #{deeplabv3_forward.1} parent=11 // pred_fallthru
        _
    $region12: #{deeplabv3_forward.1} parent=5 // pred_fallthru
      _
    %p274 = scmp.lt.s32.totalorder %s15, 2
    // Predicated region
    $region45: #{deeplabv3_forward.1} parent=5 // pred_check
      %p275 = pneg %p274
    $region46: #{deeplabv3_forward.1} parent=5 // pred_check_branch
      %277 = sbr.rel (%p275) target = $region48
    $region47: #{deeplabv3_forward.1} parent=5 // pred_region
      // Predicated region
      $region49: #{deeplabv3_forward.1} parent=47 // pred_check
        %p278 = pneg %p35
      $region50: #{deeplabv3_forward.1} parent=47 // pred_check_branch
        %280 = sbr.rel (%p278) target = $region52
      $region51: #{deeplabv3_forward.1} parent=47 // pred_region
        %p281 = scmp.lt.s32.totalorder %s15, 1
        %s282 = scalar_select %p281, %s15, 1
        %s283 = smul.addr %s282, 3
        %s284 = smul.addr %s283, 8
        %s285 = scalar_lea.vmem %s0, %s284
      $region52: #{deeplabv3_forward.1} parent=47 // pred_fallthru
        _
    $region48: #{deeplabv3_forward.1} parent=5 // pred_fallthru
      _
    %p286 = scmp.le.s32.totalorder 1, %s15
    %p287 = scmp.lt.s32.totalorder %s15, 3
    %p288 = pnand %p286, %p287
    %p289 = pneg %p288
    // Predicated region
    $region53: #{deeplabv3_forward.1} parent=5 // pred_check
      _
    $region54: #{deeplabv3_forward.1} parent=5 // pred_check_branch
      %291 = sbr.rel (%p288) target = $region56
    $region55: #{deeplabv3_forward.1} parent=5 // pred_region
      %s292 = ssub.s32 %s15, 1
      %p293 = scmp.lt.s32.totalorder %s20, 1
      %s294 = scalar_select %p293, %s20, 1
      %s295 = smul.addr %s294, 3
      %s296 = smul.addr %s295, 8
      %s297 = scalar_lea.vmem %s0, %s296
      %p298 = pneg %p41
      %p299 = pneg %p38
      %p300 = pneg %p62
      %p301 = pneg %p59
      %p302 = pneg %p83
      %p303 = pneg %p80
      %p304 = pneg %p104
      %p305 = pneg %p101
      %p306 = pneg %p125
      %p307 = pneg %p122
      %p308 = pneg %p146
      %p309 = pneg %p143
      %p310 = pneg %p167
      %p311 = pneg %p164
      %p312 = pneg %p188
      %p313 = pneg %p185
      %p314 = pneg %p209
      %p315 = pneg %p206
      %p316 = pneg %p235
      %p317 = pneg %p232
      %p318 = scmp.lt.s32.totalorder %s20, 1
      %s319 = scalar_select %p318, %s20, 1
      %s320 = scalar_lea.vmem %s9, %s319
      %p321 = scmp.lt.s32.totalorder %s20, 1
      %s322 = scalar_select %p321, %s20, 1
      %s323 = smul.addr %s322, 3
      %s324 = smul.addr %s323, 8
      %s325 = scalar_lea.vmem %s0, %s324
      %p326 = scmp.lt.s32.totalorder %s20, 1
      %s327 = scalar_select %p326, %s20, 1
      %s328 = scalar_lea.vmem %s9, %s327
      %v329 = vld [vmem:[%s325] sm:$0xff]
      %v330 = vld [vmem:[%s325 + $0x8] sm:$0xff]
      %v331 = vld [vmem:[%s325 + $0x10] sm:$0x3]
      %v332 = vld [vmem:[%s1] sm:$0xff]
      %v333 = vld [vmem:[%s1 + $0x8] sm:$0xff]
      %v334 = vld [vmem:[%s1 + $0x10] sm:$0xff]
      %v335 = vld [vmem:[%s1 + $0x18] sm:$0xff]
      %v336 = vld [vmem:[%s1 + $0x20] sm:$0xff]
      %v337 = vld [vmem:[%s1 + $0x28] sm:$0xff]
      %v338 = vld [vmem:[%s1 + $0x30] sm:$0xff]
      %v339 = vld [vmem:[%s1 + $0x38] sm:$0xff]
      %s340 = scalar_lea.vmem %s1, 64
      %v341 = vld [vmem:[%s340] sm:$0xff]
      %v342 = vld [vmem:[%s340 + $0x8] sm:$0xff]
      %v343 = vld [vmem:[%s340 + $0x10] sm:$0xff]
      %v344 = vld [vmem:[%s340 + $0x18] sm:$0xff]
      %v345 = vld [vmem:[%s340 + $0x20] sm:$0xff]
      %v346 = vld [vmem:[%s340 + $0x28] sm:$0xff]
      %v347 = vld [vmem:[%s340 + $0x30] sm:$0xff]
      %v348 = vld [vmem:[%s340 + $0x38] sm:$0xff]
      %351 = vrot.lane.b32.xlu0 %v329, 124
      %v352 = vpop.permute.xlu0 %351
      %353 = vrot.lane.b32.xlu0 %v330, 124
      %v354 = vpop.permute.xlu0 %353
      %vm355 = vcmask 523264
      %v356 = vsel %vm355, %v352, 0
      %v358 = vsel %vm355, %v354, 0
      %360 = vmatprep.subr.mxu0 0.0
      %361 = vmatpush1.msra.mxu0 %v341
      %362 = vmatprep.subr.mxu0 0.0
      %363 = vmatpush1.msra.mxu0 %v342
      %364 = vmatprep.subr.mxu0 0.0
      %365 = vmatpush1.msra.mxu0 %v343
      %366 = vmatprep.subr.mxu0 0.0
      %367 = vmatpush1.msra.mxu0 %v344
      %368 = vmatprep.subr.mxu0 0.0
      %369 = vmatpush1.msra.mxu0 %v345
      %370 = vmatprep.subr.mxu0 0.0
      %371 = vmatpush1.msra.mxu0 %v346
      %372 = vmatprep.subr.mxu0 0.0
      %373 = vmatpush1.msra.mxu0 %v347
      %374 = vmatprep.subr.mxu0 0.0
      %375 = vmatpush1.msra.mxu0 %v348
      %376 = vmatprep.subr.mxu0 0.0
      %377 = vmatpush1.msra.mxu0 0.0
      %378 = vmatprep.subr.mxu0 0.0
      %379 = vmatpush1.msra.mxu0 0.0
      %380 = vmatprep.subr.mxu0 0.0
      %381 = vmatpush1.msra.mxu0 0.0
      %382 = vmatprep.subr.mxu0 0.0
      %383 = vmatpush1.msra.mxu0 0.0
      %384 = vmatprep.subr.mxu0 0.0
      %385 = vmatpush1.msra.mxu0 0.0
      %386 = vmatprep.subr.mxu0 0.0
      %387 = vmatpush1.msra.mxu0 0.0
      %388 = vmatprep.subr.mxu0 0.0
      %389 = vmatpush1.msra.mxu0 0.0
      %390 = vmatprep.subr.mxu0 0.0
      %391 = vmatpush1.msra.mxu0 0.0
      %392 = vmatprep.subr.mxu0 0.0
      %393 = vmatpush1.msra.mxu0 0.0
      %394 = vmatprep.subr.mxu0 0.0
      %395 = vmatpush1.msra.mxu0 0.0
      %396 = vmatprep.subr.mxu0 0.0
      %397 = vmatpush1.msra.mxu0 0.0
      %398 = vmatprep.subr.mxu0 0.0
      %399 = vmatpush1.msra.mxu0 0.0
      %400 = vmatprep.subr.mxu0 0.0
      %401 = vmatpush1.msra.mxu0 0.0
      %402 = vmatprep.subr.mxu0 0.0
      %403 = vmatpush1.msra.mxu0 0.0
      %404 = vmatprep.subr.mxu0 0.0
      %405 = vmatpush1.msra.mxu0 0.0
      %406 = vmatprep.subr.mxu0 0.0
      %407 = vmatpush1.msra.mxu0 0.0
      %408 = vmatprep.subr.mxu0 0.0
      %409 = vmatpush1.msra.mxu0 0.0
      %410 = vmatprep.subr.mxu0 0.0
      %411 = vmatpush1.msra.mxu0 0.0
      %412 = vmatprep.subr.mxu0 0.0
      %413 = vmatpush1.msra.mxu0 0.0
      %414 = vmatprep.subr.mxu0 0.0
      %415 = vmatpush1.msra.mxu0 0.0
      %416 = vmatprep.subr.mxu0 0.0
      %417 = vmatpush1.msra.mxu0 0.0
      %418 = vmatprep.subr.mxu0 0.0
      %419 = vmatpush1.msra.mxu0 0.0
      %420 = vmatprep.subr.mxu0 0.0
      %421 = vmatpush1.msra.mxu0 0.0
      %422 = vmatprep.subr.mxu0 0.0
      %423 = vmatpush1.msra.mxu0 0.0
      %424 = vmatprep.mubr.f32.mxu0 0.0
      %425 = vmatmul.mubr.f32.gmra.mrb[0].mxu0 %v356
      %v426 = vpop.f32.mrb[0].mxu0
      %v427 = vadd.f32 0.0, %v426
      %v428 = vpop.f32.mrb[0].mxu0
      %429 = vmatprep.mubr.f32.mxu0 0.0
      %430 = vmatmul.mubr.f32.gmra.mrb[0].mxu0 %v358
      %v431 = vpop.f32.mrb[0].mxu0
      %v432 = vadd.f32 0.0, %v431
      %v433 = vpop.f32.mrb[0].mxu0
      %434 = vdwg.mxu0
      %v435 = vsel %vm355, %v329, 0
      %v437 = vsel %vm355, %v330, 0
      %439 = vmatprep.subr.mxu0 0.0
      %440 = vmatpush1.msra.mxu0 %v332
      %441 = vmatprep.subr.mxu0 0.0
      %442 = vmatpush1.msra.mxu0 %v333
      %443 = vmatprep.subr.mxu0 0.0
      %444 = vmatpush1.msra.mxu0 %v334
      %445 = vmatprep.subr.mxu0 0.0
      %446 = vmatpush1.msra.mxu0 %v335
      %447 = vmatprep.subr.mxu0 0.0
      %448 = vmatpush1.msra.mxu0 %v336
      %449 = vmatprep.subr.mxu0 0.0
      %450 = vmatpush1.msra.mxu0 %v337
      %451 = vmatprep.subr.mxu0 0.0
      %452 = vmatpush1.msra.mxu0 %v338
      %453 = vmatprep.subr.mxu0 0.0
      %454 = vmatpush1.msra.mxu0 %v339
      %455 = vmatprep.subr.mxu0 0.0
      %456 = vmatpush1.msra.mxu0 0.0
      %457 = vmatprep.subr.mxu0 0.0
      %458 = vmatpush1.msra.mxu0 0.0
      %459 = vmatprep.subr.mxu0 0.0
      %460 = vmatpush1.msra.mxu0 0.0
      %461 = vmatprep.subr.mxu0 0.0
      %462 = vmatpush1.msra.mxu0 0.0
      %463 = vmatprep.subr.mxu0 0.0
      %464 = vmatpush1.msra.mxu0 0.0
      %465 = vmatprep.subr.mxu0 0.0
      %466 = vmatpush1.msra.mxu0 0.0
      %467 = vmatprep.subr.mxu0 0.0
      %468 = vmatpush1.msra.mxu0 0.0
      %469 = vmatprep.subr.mxu0 0.0
      %470 = vmatpush1.msra.mxu0 0.0
      %471 = vmatprep.subr.mxu0 0.0
      %472 = vmatpush1.msra.mxu0 0.0
      %473 = vmatprep.subr.mxu0 0.0
      %474 = vmatpush1.msra.mxu0 0.0
      %475 = vmatprep.subr.mxu0 0.0
      %476 = vmatpush1.msra.mxu0 0.0
      %477 = vmatprep.subr.mxu0 0.0
      %478 = vmatpush1.msra.mxu0 0.0
      %479 = vmatprep.subr.mxu0 0.0
      %480 = vmatpush1.msra.mxu0 0.0
      %481 = vmatprep.subr.mxu0 0.0
      %482 = vmatpush1.msra.mxu0 0.0
      %483 = vmatprep.subr.mxu0 0.0
      %484 = vmatpush1.msra.mxu0 0.0
      %485 = vmatprep.subr.mxu0 0.0
      %486 = vmatpush1.msra.mxu0 0.0
      %487 = vmatprep.subr.mxu0 0.0
      %488 = vmatpush1.msra.mxu0 0.0
      %489 = vmatprep.subr.mxu0 0.0
      %490 = vmatpush1.msra.mxu0 0.0
      %491 = vmatprep.subr.mxu0 0.0
      %492 = vmatpush1.msra.mxu0 0.0
      %493 = vmatprep.subr.mxu0 0.0
      %494 = vmatpush1.msra.mxu0 0.0
      %495 = vmatprep.subr.mxu0 0.0
      %496 = vmatpush1.msra.mxu0 0.0
      %497 = vmatprep.subr.mxu0 0.0
      %498 = vmatpush1.msra.mxu0 0.0
      %499 = vmatprep.subr.mxu0 0.0
      %500 = vmatpush1.msra.mxu0 0.0
      %501 = vmatprep.subr.mxu0 0.0
      %502 = vmatpush1.msra.mxu0 0.0
      %503 = vmatprep.mubr.f32.mxu0 0.0
      %504 = vmatmul.mubr.f32.gmra.mrb[0].mxu0 %v435
      %v505 = vpop.f32.mrb[0].mxu0
      %v506 = vadd.f32 %v427, %v505
      %v507 = vpop.f32.mrb[0].mxu0
      %508 = vmatprep.mubr.f32.mxu0 0.0
      %509 = vmatmul.mubr.f32.gmra.mrb[0].mxu0 %v437
      %v510 = vpop.f32.mrb[0].mxu0
      %v511 = vadd.f32 %v432, %v510
      %v512 = vpop.f32.mrb[0].mxu0
      %513 = vdwg.mxu0
      %s514 = scalar_lea.vmem %s1, 128
      %v515 = vld [vmem:[%s514] sm:$0xff]
      %v516 = vld [vmem:[%s514 + $0x8] sm:$0xff]
      %v517 = vld [vmem:[%s514 + $0x10] sm:$0xff]
      %v518 = vld [vmem:[%s514 + $0x18] sm:$0xff]
      %v519 = vld [vmem:[%s514 + $0x20] sm:$0xff]
      %v520 = vld [vmem:[%s514 + $0x28] sm:$0xff]
      %v521 = vld [vmem:[%s514 + $0x30] sm:$0xff]
      %v522 = vld [vmem:[%s514 + $0x38] sm:$0xff]
      %523 = vrot.lane.b32.xlu0 %v329, 120
      %v524 = vpop.permute.xlu0 %523
      %525 = vrot.lane.b32.xlu0 %v330, 120
      %v526 = vpop.permute.xlu0 %525
      %v527 = vsel %vm355, %v524, 0
      %v529 = vsel %vm355, %v526, 0
      %531 = vmatprep.subr.mxu0 0.0
      %532 = vmatpush1.msra.mxu0 %v515
      %533 = vmatprep.subr.mxu0 0.0
      %534 = vmatpush1.msra.mxu0 %v516
      %535 = vmatprep.subr.mxu0 0.0
      %536 = vmatpush1.msra.mxu0 %v517
      %537 = vmatprep.subr.mxu0 0.0
      %538 = vmatpush1.msra.mxu0 %v518
      %539 = vmatprep.subr.mxu0 0.0
      %540 = vmatpush1.msra.mxu0 %v519
      %541 = vmatprep.subr.mxu0 0.0
      %542 = vmatpush1.msra.mxu0 %v520
      %543 = vmatprep.subr.mxu0 0.0
      %544 = vmatpush1.msra.mxu0 %v521
      %545 = vmatprep.subr.mxu0 0.0
      %546 = vmatpush1.msra.mxu0 %v522
      %547 = vmatprep.subr.mxu0 0.0
      %548 = vmatpush1.msra.mxu0 0.0
      %549 = vmatprep.subr.mxu0 0.0
      %550 = vmatpush1.msra.mxu0 0.0
      %551 = vmatprep.subr.mxu0 0.0
      %552 = vmatpush1.msra.mxu0 0.0
      %553 = vmatprep.subr.mxu0 0.0
      %554 = vmatpush1.msra.mxu0 0.0
      %555 = vmatprep.subr.mxu0 0.0
      %556 = vmatpush1.msra.mxu0 0.0
      %557 = vmatprep.subr.mxu0 0.0
      %558 = vmatpush1.msra.mxu0 0.0
      %559 = vmatprep.subr.mxu0 0.0
      %560 = vmatpush1.msra.mxu0 0.0
      %561 = vmatprep.subr.mxu0 0.0
      %562 = vmatpush1.msra.mxu0 0.0
      %563 = vmatprep.subr.mxu0 0.0
      %564 = vmatpush1.msra.mxu0 0.0
      %565 = vmatprep.subr.mxu0 0.0
      %566 = vmatpush1.msra.mxu0 0.0
      %567 = vmatprep.subr.mxu0 0.0
      %568 = vmatpush1.msra.mxu0 0.0
      %569 = vmatprep.subr.mxu0 0.0
      %570 = vmatpush1.msra.mxu0 0.0
      %571 = vmatprep.subr.mxu0 0.0
      %572 = vmatpush1.msra.mxu0 0.0
      %573 = vmatprep.subr.mxu0 0.0
      %574 = vmatpush1.msra.mxu0 0.0
      %575 = vmatprep.subr.mxu0 0.0
      %576 = vmatpush1.msra.mxu0 0.0
      %577 = vmatprep.subr.mxu0 0.0
      %578 = vmatpush1.msra.mxu0 0.0
      %579 = vmatprep.subr.mxu0 0.0
      %580 = vmatpush1.msra.mxu0 0.0
      %581 = vmatprep.subr.mxu0 0.0
      %582 = vmatpush1.msra.mxu0 0.0
      %583 = vmatprep.subr.mxu0 0.0
      %584 = vmatpush1.msra.mxu0 0.0
      %585 = vmatprep.subr.mxu0 0.0
      %586 = vmatpush1.msra.mxu0 0.0
      %587 = vmatprep.subr.mxu0 0.0
      %588 = vmatpush1.msra.mxu0 0.0
      %589 = vmatprep.subr.mxu0 0.0
      %590 = vmatpush1.msra.mxu0 0.0
      %591 = vmatprep.subr.mxu0 0.0
      %592 = vmatpush1.msra.mxu0 0.0
      %593 = vmatprep.subr.mxu0 0.0
      %594 = vmatpush1.msra.mxu0 0.0
      %595 = vmatprep.mubr.f32.mxu0 0.0
      %596 = vmatmul.mubr.f32.gmra.mrb[0].mxu0 %v527
      %v597 = vpop.f32.mrb[0].mxu0
      %v598 = vadd.f32 0.0, %v597
      %v599 = vpop.f32.mrb[0].mxu0
      %600 = vmatprep.mubr.f32.mxu0 0.0
      %601 = vmatmul.mubr.f32.gmra.mrb[0].mxu0 %v529
      %v602 = vpop.f32.mrb[0].mxu0
      %v603 = vadd.f32 0.0, %v602
      %v604 = vpop.f32.mrb[0].mxu0
      %605 = vdwg.mxu0
      %v606 = vadd.f32 %v506, %v598
      %v607 = vadd.f32 %v511, %v603
      %s608 = scalar_lea.vmem %s1, 192
      %v609 = vld [vmem:[%s608] sm:$0xff]
      %v610 = vld [vmem:[%s608 + $0x8] sm:$0xff]
      %v611 = vld [vmem:[%s608 + $0x10] sm:$0xff]
      %v612 = vld [vmem:[%s608 + $0x18] sm:$0xff]
      %v613 = vld [vmem:[%s608 + $0x20] sm:$0xff]
      %v614 = vld [vmem:[%s608 + $0x28] sm:$0xff]
      %v615 = vld [vmem:[%s608 + $0x30] sm:$0xff]
      %v616 = vld [vmem:[%s608 + $0x38] sm:$0xff]
      %vm618 = vcmask 1046528
      %v619 = vrot.slane %v329, 1
      %v620 = vrot.slane %v330, 1
      %v621 = vsel %vm618, %v619, %v620
      %v622 = vrot.slane %v331, 1
      %v623 = vsel %vm618, %v620, %v622
      %v624 = vsel %vm355, %v621, 0
      %v626 = vsel %vm355, %v623, 0
      %628 = vmatprep.subr.mxu0 0.0
      %629 = vmatpush1.msra.mxu0 %v609
      %630 = vmatprep.subr.mxu0 0.0
      %631 = vmatpush1.msra.mxu0 %v610
      %632 = vmatprep.subr.mxu0 0.0
      %633 = vmatpush1.msra.mxu0 %v611
      %634 = vmatprep.subr.mxu0 0.0
      %635 = vmatpush1.msra.mxu0 %v612
      %636 = vmatprep.subr.mxu0 0.0
      %637 = vmatpush1.msra.mxu0 %v613
      %638 = vmatprep.subr.mxu0 0.0
      %639 = vmatpush1.msra.mxu0 %v614
      %640 = vmatprep.subr.mxu0 0.0
      %641 = vmatpush1.msra.mxu0 %v615
      %642 = vmatprep.subr.mxu0 0.0
      %643 = vmatpush1.msra.mxu0 %v616
      %644 = vmatprep.subr.mxu0 0.0
      %645 = vmatpush1.msra.mxu0 0.0
      %646 = vmatprep.subr.mxu0 0.0
      %647 = vmatpush1.msra.mxu0 0.0
      %648 = vmatprep.subr.mxu0 0.0
      %649 = vmatpush1.msra.mxu0 0.0
      %650 = vmatprep.subr.mxu0 0.0
      %651 = vmatpush1.msra.mxu0 0.0
      %652 = vmatprep.subr.mxu0 0.0
      %653 = vmatpush1.msra.mxu0 0.0
      %654 = vmatprep.subr.mxu0 0.0
      %655 = vmatpush1.msra.mxu0 0.0
      %656 = vmatprep.subr.mxu0 0.0
      %657 = vmatpush1.msra.mxu0 0.0
      %658 = vmatprep.subr.mxu0 0.0
      %659 = vmatpush1.msra.mxu0 0.0
      %660 = vmatprep.subr.mxu0 0.0
      %661 = vmatpush1.msra.mxu0 0.0
      %662 = vmatprep.subr.mxu0 0.0
      %663 = vmatpush1.msra.mxu0 0.0
      %664 = vmatprep.subr.mxu0 0.0
      %665 = vmatpush1.msra.mxu0 0.0
      %666 = vmatprep.subr.mxu0 0.0
      %667 = vmatpush1.msra.mxu0 0.0
      %668 = vmatprep.subr.mxu0 0.0
      %669 = vmatpush1.msra.mxu0 0.0
      %670 = vmatprep.subr.mxu0 0.0
      %671 = vmatpush1.msra.mxu0 0.0
      %672 = vmatprep.subr.mxu0 0.0
      %673 = vmatpush1.msra.mxu0 0.0
      %674 = vmatprep.subr.mxu0 0.0
      %675 = vmatpush1.msra.mxu0 0.0
      %676 = vmatprep.subr.mxu0 0.0
      %677 = vmatpush1.msra.mxu0 0.0
      %678 = vmatprep.subr.mxu0 0.0
      %679 = vmatpush1.msra.mxu0 0.0
      %680 = vmatprep.subr.mxu0 0.0
      %681 = vmatpush1.msra.mxu0 0.0
      %682 = vmatprep.subr.mxu0 0.0
      %683 = vmatpush1.msra.mxu0 0.0
      %684 = vmatprep.subr.mxu0 0.0
      %685 = vmatpush1.msra.mxu0 0.0
      %686 = vmatprep.subr.mxu0 0.0
      %687 = vmatpush1.msra.mxu0 0.0
      %688 = vmatprep.subr.mxu0 0.0
      %689 = vmatpush1.msra.mxu0 0.0
      %690 = vmatprep.subr.mxu0 0.0
      %691 = vmatpush1.msra.mxu0 0.0
      %692 = vmatprep.mubr.f32.mxu0 0.0
      %693 = vmatmul.mubr.f32.gmra.mrb[0].mxu0 %v624
      %v694 = vpop.f32.mrb[0].mxu0
      %v695 = vadd.f32 0.0, %v694
      %v696 = vpop.f32.mrb[0].mxu0
      %697 = vmatprep.mubr.f32.mxu0 0.0
      %698 = vmatmul.mubr.f32.gmra.mrb[0].mxu0 %v626
      %v699 = vpop.f32.mrb[0].mxu0
      %v700 = vadd.f32 0.0, %v699
      %v701 = vpop.f32.mrb[0].mxu0
      %702 = vdwg.mxu0
      %v703 = vadd.f32 %v606, %v695
      %v704 = vadd.f32 %v607, %v700
      %s705 = scalar_lea.vmem %s1, 256
      %v706 = vld [vmem:[%s705] sm:$0xff]
      %v707 = vld [vmem:[%s705 + $0x8] sm:$0xff]
      %v708 = vld [vmem:[%s705 + $0x10] sm:$0xff]
      %v709 = vld [vmem:[%s705 + $0x18] sm:$0xff]
      %v710 = vld [vmem:[%s705 + $0x20] sm:$0xff]
      %v711 = vld [vmem:[%s705 + $0x28] sm:$0xff]
      %v712 = vld [vmem:[%s705 + $0x30] sm:$0xff]
      %v713 = vld [vmem:[%s705 + $0x38] sm:$0xff]
      %714 = vrot.lane.b32.xlu0 %v621, 124
      %v715 = vpop.permute.xlu0 %714
      %716 = vrot.lane.b32.xlu0 %v623, 124
      %v717 = vpop.permute.xlu0 %716
      %v718 = vsel %vm355, %v715, 0
      %v720 = vsel %vm355, %v717, 0
      %722 = vmatprep.subr.mxu0 0.0
      %723 = vmatpush1.msra.mxu0 %v706
      %724 = vmatprep.subr.mxu0 0.0
      %725 = vmatpush1.msra.mxu0 %v707
      %726 = vmatprep.subr.mxu0 0.0
      %727 = vmatpush1.msra.mxu0 %v708
      %728 = vmatprep.subr.mxu0 0.0
      %729 = vmatpush1.msra.mxu0 %v709
      %730 = vmatprep.subr.mxu0 0.0
      %731 = vmatpush1.msra.mxu0 %v710
      %732 = vmatprep.subr.mxu0 0.0
      %733 = vmatpush1.msra.mxu0 %v711
      %734 = vmatprep.subr.mxu0 0.0
      %735 = vmatpush1.msra.mxu0 %v712
      %736 = vmatprep.subr.mxu0 0.0
      %737 = vmatpush1.msra.mxu0 %v713
      %738 = vmatprep.subr.mxu0 0.0
      %739 = vmatpush1.msra.mxu0 0.0
      %740 = vmatprep.subr.mxu0 0.0
      %741 = vmatpush1.msra.mxu0 0.0
      %742 = vmatprep.subr.mxu0 0.0
      %743 = vmatpush1.msra.mxu0 0.0
      %744 = vmatprep.subr.mxu0 0.0
      %745 = vmatpush1.msra.mxu0 0.0
      %746 = vmatprep.subr.mxu0 0.0
      %747 = vmatpush1.msra.mxu0 0.0
      %748 = vmatprep.subr.mxu0 0.0
      %749 = vmatpush1.msra.mxu0 0.0
      %750 = vmatprep.subr.mxu0 0.0
      %751 = vmatpush1.msra.mxu0 0.0
      %752 = vmatprep.subr.mxu0 0.0
      %753 = vmatpush1.msra.mxu0 0.0
      %754 = vmatprep.subr.mxu0 0.0
      %755 = vmatpush1.msra.mxu0 0.0
      %756 = vmatprep.subr.mxu0 0.0
      %757 = vmatpush1.msra.mxu0 0.0
      %758 = vmatprep.subr.mxu0 0.0
      %759 = vmatpush1.msra.mxu0 0.0
      %760 = vmatprep.subr.mxu0 0.0
      %761 = vmatpush1.msra.mxu0 0.0
      %762 = vmatprep.subr.mxu0 0.0
      %763 = vmatpush1.msra.mxu0 0.0
      %764 = vmatprep.subr.mxu0 0.0
      %765 = vmatpush1.msra.mxu0 0.0
      %766 = vmatprep.subr.mxu0 0.0
      %767 = vmatpush1.msra.mxu0 0.0
      %768 = vmatprep.subr.mxu0 0.0
      %769 = vmatpush1.msra.mxu0 0.0
      %770 = vmatprep.subr.mxu0 0.0
      %771 = vmatpush1.msra.mxu0 0.0
      %772 = vmatprep.subr.mxu0 0.0
      %773 = vmatpush1.msra.mxu0 0.0
      %774 = vmatprep.subr.mxu0 0.0
      %775 = vmatpush1.msra.mxu0 0.0
      %776 = vmatprep.subr.mxu0 0.0
      %777 = vmatpush1.msra.mxu0 0.0
      %778 = vmatprep.subr.mxu0 0.0
      %779 = vmatpush1.msra.mxu0 0.0
      %780 = vmatprep.subr.mxu0 0.0
      %781 = vmatpush1.msra.mxu0 0.0
      %782 = vmatprep.subr.mxu0 0.0
      %783 = vmatpush1.msra.mxu0 0.0
      %784 = vmatprep.subr.mxu0 0.0
      %785 = vmatpush1.msra.mxu0 0.0
      %786 = vmatprep.mubr.f32.mxu0 0.0
      %787 = vmatmul.mubr.f32.gmra.mrb[0].mxu0 %v718
      %v788 = vpop.f32.mrb[0].mxu0
      %v789 = vadd.f32 0.0, %v788
      %v790 = vpop.f32.mrb[0].mxu0
      %791 = vmatprep.mubr.f32.mxu0 0.0
      %792 = vmatmul.mubr.f32.gmra.mrb[0].mxu0 %v720
      %v793 = vpop.f32.mrb[0].mxu0
      %v794 = vadd.f32 0.0, %v793
      %v795 = vpop.f32.mrb[0].mxu0
      %796 = vdwg.mxu0
      %v797 = vadd.f32 %v703, %v789
      %v798 = vadd.f32 %v704, %v794
      %s799 = scalar_lea.vmem %s1, 320
      %v800 = vld [vmem:[%s799] sm:$0xff]
      %v801 = vld [vmem:[%s799 + $0x8] sm:$0xff]
      %v802 = vld [vmem:[%s799 + $0x10] sm:$0xff]
      %v803 = vld [vmem:[%s799 + $0x18] sm:$0xff]
      %v804 = vld [vmem:[%s799 + $0x20] sm:$0xff]
      %v805 = vld [vmem:[%s799 + $0x28] sm:$0xff]
      %v806 = vld [vmem:[%s799 + $0x30] sm:$0xff]
      %v807 = vld [vmem:[%s799 + $0x38] sm:$0xff]
      %808 = vrot.lane.b32.xlu0 %v621, 120
      %v809 = vpop.permute.xlu0 %808
      %810 = vrot.lane.b32.xlu0 %v623, 120
      %v811 = vpop.permute.xlu0 %810
      %v812 = vsel %vm355, %v809, 0
      %v814 = vsel %vm355, %v811, 0
      %816 = vmatprep.subr.mxu0 0.0
      %817 = vmatpush1.msra.mxu0 %v800
      %818 = vmatprep.subr.mxu0 0.0
      %819 = vmatpush1.msra.mxu0 %v801
      %820 = vmatprep.subr.mxu0 0.0
      %821 = vmatpush1.msra.mxu0 %v802
      %822 = vmatprep.subr.mxu0 0.0
      %823 = vmatpush1.msra.mxu0 %v803
      %824 = vmatprep.subr.mxu0 0.0
      %825 = vmatpush1.msra.mxu0 %v804
      %826 = vmatprep.subr.mxu0 0.0
      %827 = vmatpush1.msra.mxu0 %v805
      %828 = vmatprep.subr.mxu0 0.0
      %829 = vmatpush1.msra.mxu0 %v806
      %830 = vmatprep.subr.mxu0 0.0
      %831 = vmatpush1.msra.mxu0 %v807
      %832 = vmatprep.subr.mxu0 0.0
      %833 = vmatpush1.msra.mxu0 0.0
      %834 = vmatprep.subr.mxu0 0.0
      %835 = vmatpush1.msra.mxu0 0.0
      %836 = vmatprep.subr.mxu0 0.0
      %837 = vmatpush1.msra.mxu0 0.0
      %838 = vmatprep.subr.mxu0 0.0
      %839 = vmatpush1.msra.mxu0 0.0
      %840 = vmatprep.subr.mxu0 0.0
      %841 = vmatpush1.msra.mxu0 0.0
      %842 = vmatprep.subr.mxu0 0.0
      %843 = vmatpush1.msra.mxu0 0.0
      %844 = vmatprep.subr.mxu0 0.0
      %845 = vmatpush1.msra.mxu0 0.0
      %846 = vmatprep.subr.mxu0 0.0
      %847 = vmatpush1.msra.mxu0 0.0
      %848 = vmatprep.subr.mxu0 0.0
      %849 = vmatpush1.msra.mxu0 0.0
      %850 = vmatprep.subr.mxu0 0.0
      %851 = vmatpush1.msra.mxu0 0.0
      %852 = vmatprep.subr.mxu0 0.0
      %853 = vmatpush1.msra.mxu0 0.0
      %854 = vmatprep.subr.mxu0 0.0
      %855 = vmatpush1.msra.mxu0 0.0
      %856 = vmatprep.subr.mxu0 0.0
      %857 = vmatpush1.msra.mxu0 0.0
      %858 = vmatprep.subr.mxu0 0.0
      %859 = vmatpush1.msra.mxu0 0.0
      %860 = vmatprep.subr.mxu0 0.0
      %861 = vmatpush1.msra.mxu0 0.0
      %862 = vmatprep.subr.mxu0 0.0
      %863 = vmatpush1.msra.mxu0 0.0
      %864 = vmatprep.subr.mxu0 0.0
      %865 = vmatpush1.msra.mxu0 0.0
      %866 = vmatprep.subr.mxu0 0.0
      %867 = vmatpush1.msra.mxu0 0.0
      %868 = vmatprep.subr.mxu0 0.0
      %869 = vmatpush1.msra.mxu0 0.0
      %870 = vmatprep.subr.mxu0 0.0
      %871 = vmatpush1.msra.mxu0 0.0
      %872 = vmatprep.subr.mxu0 0.0
      %873 = vmatpush1.msra.mxu0 0.0
      %874 = vmatprep.subr.mxu0 0.0
      %875 = vmatpush1.msra.mxu0 0.0
      %876 = vmatprep.subr.mxu0 0.0
      %877 = vmatpush1.msra.mxu0 0.0
      %878 = vmatprep.subr.mxu0 0.0
      %879 = vmatpush1.msra.mxu0 0.0
      %880 = vmatprep.mubr.f32.mxu0 0.0
      %881 = vmatmul.mubr.f32.gmra.mrb[0].mxu0 %v812
      %v882 = vpop.f32.mrb[0].mxu0
      %v883 = vadd.f32 0.0, %v882
      %v884 = vpop.f32.mrb[0].mxu0
      %885 = vmatprep.mubr.f32.mxu0 0.0
      %886 = vmatmul.mubr.f32.gmra.mrb[0].mxu0 %v814
      %v887 = vpop.f32.mrb[0].mxu0
      %v888 = vadd.f32 0.0, %v887
      %v889 = vpop.f32.mrb[0].mxu0
      %890 = vdwg.mxu0
      %v891 = vadd.f32 %v797, %v883
      %v892 = vadd.f32 %v798, %v888
      %s893 = scalar_lea.vmem %s1, 384
      %v894 = vld [vmem:[%s893] sm:$0xff]
      %v895 = vld [vmem:[%s893 + $0x8] sm:$0xff]
      %v896 = vld [vmem:[%s893 + $0x10] sm:$0xff]
      %v897 = vld [vmem:[%s893 + $0x18] sm:$0xff]
      %v898 = vld [vmem:[%s893 + $0x20] sm:$0xff]
      %v899 = vld [vmem:[%s893 + $0x28] sm:$0xff]
      %v900 = vld [vmem:[%s893 + $0x30] sm:$0xff]
      %v901 = vld [vmem:[%s893 + $0x38] sm:$0xff]
      %vm902 = vcmask 1045504
      %v903 = vrot.slane %v329, 2
      %v904 = vrot.slane %v330, 2
      %v905 = vsel %vm902, %v903, %v904
      %v906 = vrot.slane %v331, 2
      %v907 = vsel %vm902, %v904, %v906
      %v908 = vsel %vm355, %v905, 0
      %v910 = vsel %vm355, %v907, 0
      %912 = vmatprep.subr.mxu0 0.0
      %913 = vmatpush1.msra.mxu0 %v894
      %914 = vmatprep.subr.mxu0 0.0
      %915 = vmatpush1.msra.mxu0 %v895
      %916 = vmatprep.subr.mxu0 0.0
      %917 = vmatpush1.msra.mxu0 %v896
      %918 = vmatprep.subr.mxu0 0.0
      %919 = vmatpush1.msra.mxu0 %v897
      %920 = vmatprep.subr.mxu0 0.0
      %921 = vmatpush1.msra.mxu0 %v898
      %922 = vmatprep.subr.mxu0 0.0
      %923 = vmatpush1.msra.mxu0 %v899
      %924 = vmatprep.subr.mxu0 0.0
      %925 = vmatpush1.msra.mxu0 %v900
      %926 = vmatprep.subr.mxu0 0.0
      %927 = vmatpush1.msra.mxu0 %v901
      %928 = vmatprep.subr.mxu0 0.0
      %929 = vmatpush1.msra.mxu0 0.0
      %930 = vmatprep.subr.mxu0 0.0
      %931 = vmatpush1.msra.mxu0 0.0
      %932 = vmatprep.subr.mxu0 0.0
      %933 = vmatpush1.msra.mxu0 0.0
      %934 = vmatprep.subr.mxu0 0.0
      %935 = vmatpush1.msra.mxu0 0.0
      %936 = vmatprep.subr.mxu0 0.0
      %937 = vmatpush1.msra.mxu0 0.0
      %938 = vmatprep.subr.mxu0 0.0
      %939 = vmatpush1.msra.mxu0 0.0
      %940 = vmatprep.subr.mxu0 0.0
      %941 = vmatpush1.msra.mxu0 0.0
      %942 = vmatprep.subr.mxu0 0.0
      %943 = vmatpush1.msra.mxu0 0.0
      %944 = vmatprep.subr.mxu0 0.0
      %945 = vmatpush1.msra.mxu0 0.0
      %946 = vmatprep.subr.mxu0 0.0
      %947 = vmatpush1.msra.mxu0 0.0
      %948 = vmatprep.subr.mxu0 0.0
      %949 = vmatpush1.msra.mxu0 0.0
      %950 = vmatprep.subr.mxu0 0.0
      %951 = vmatpush1.msra.mxu0 0.0
      %952 = vmatprep.subr.mxu0 0.0
      %953 = vmatpush1.msra.mxu0 0.0
      %954 = vmatprep.subr.mxu0 0.0
      %955 = vmatpush1.msra.mxu0 0.0
      %956 = vmatprep.subr.mxu0 0.0
      %957 = vmatpush1.msra.mxu0 0.0
      %958 = vmatprep.subr.mxu0 0.0
      %959 = vmatpush1.msra.mxu0 0.0
      %960 = vmatprep.subr.mxu0 0.0
      %961 = vmatpush1.msra.mxu0 0.0
      %962 = vmatprep.subr.mxu0 0.0
      %963 = vmatpush1.msra.mxu0 0.0
      %964 = vmatprep.subr.mxu0 0.0
      %965 = vmatpush1.msra.mxu0 0.0
      %966 = vmatprep.subr.mxu0 0.0
      %967 = vmatpush1.msra.mxu0 0.0
      %968 = vmatprep.subr.mxu0 0.0
      %969 = vmatpush1.msra.mxu0 0.0
      %970 = vmatprep.subr.mxu0 0.0
      %971 = vmatpush1.msra.mxu0 0.0
      %972 = vmatprep.subr.mxu0 0.0
      %973 = vmatpush1.msra.mxu0 0.0
      %974 = vmatprep.subr.mxu0 0.0
      %975 = vmatpush1.msra.mxu0 0.0
      %976 = vmatprep.mubr.f32.mxu0 0.0
      %977 = vmatmul.mubr.f32.gmra.mrb[0].mxu0 %v908
      %v978 = vpop.f32.mrb[0].mxu0
      %v979 = vadd.f32 0.0, %v978
      %v980 = vpop.f32.mrb[0].mxu0
      %981 = vmatprep.mubr.f32.mxu0 0.0
      %982 = vmatmul.mubr.f32.gmra.mrb[0].mxu0 %v910
      %v983 = vpop.f32.mrb[0].mxu0
      %v984 = vadd.f32 0.0, %v983
      %v985 = vpop.f32.mrb[0].mxu0
      %986 = vdwg.mxu0
      %v987 = vadd.f32 %v891, %v979
      %v988 = vadd.f32 %v892, %v984
      %s989 = scalar_lea.vmem %s1, 448
      %v990 = vld [vmem:[%s989] sm:$0xff]
      %v991 = vld [vmem:[%s989 + $0x8] sm:$0xff]
      %v992 = vld [vmem:[%s989 + $0x10] sm:$0xff]
      %v993 = vld [vmem:[%s989 + $0x18] sm:$0xff]
      %v994 = vld [vmem:[%s989 + $0x20] sm:$0xff]
      %v995 = vld [vmem:[%s989 + $0x28] sm:$0xff]
      %v996 = vld [vmem:[%s989 + $0x30] sm:$0xff]
      %v997 = vld [vmem:[%s989 + $0x38] sm:$0xff]
      %998 = vrot.lane.b32.xlu0 %v905, 124
      %v999 = vpop.permute.xlu0 %998
      %1000 = vrot.lane.b32.xlu0 %v907, 124
      %v1001 = vpop.permute.xlu0 %1000
      %v1002 = vsel %vm355, %v999, 0
      %v1004 = vsel %vm355, %v1001, 0
      %1006 = vmatprep.subr.mxu0 0.0
      %1007 = vmatpush1.msra.mxu0 %v990
      %1008 = vmatprep.subr.mxu0 0.0
      %1009 = vmatpush1.msra.mxu0 %v991
      %1010 = vmatprep.subr.mxu0 0.0
      %1011 = vmatpush1.msra.mxu0 %v992
      %1012 = vmatprep.subr.mxu0 0.0
      %1013 = vmatpush1.msra.mxu0 %v993
      %1014 = vmatprep.subr.mxu0 0.0
      %1015 = vmatpush1.msra.mxu0 %v994
      %1016 = vmatprep.subr.mxu0 0.0
      %1017 = vmatpush1.msra.mxu0 %v995
      %1018 = vmatprep.subr.mxu0 0.0
      %1019 = vmatpush1.msra.mxu0 %v996
      %1020 = vmatprep.subr.mxu0 0.0
      %1021 = vmatpush1.msra.mxu0 %v997
      %1022 = vmatprep.subr.mxu0 0.0
      %1023 = vmatpush1.msra.mxu0 0.0
      %1024 = vmatprep.subr.mxu0 0.0
      %1025 = vmatpush1.msra.mxu0 0.0
      %1026 = vmatprep.subr.mxu0 0.0
      %1027 = vmatpush1.msra.mxu0 0.0
      %1028 = vmatprep.subr.mxu0 0.0
      %1029 = vmatpush1.msra.mxu0 0.0
      %1030 = vmatprep.subr.mxu0 0.0
      %1031 = vmatpush1.msra.mxu0 0.0
      %1032 = vmatprep.subr.mxu0 0.0
      %1033 = vmatpush1.msra.mxu0 0.0
      %1034 = vmatprep.subr.mxu0 0.0
      %1035 = vmatpush1.msra.mxu0 0.0
      %1036 = vmatprep.subr.mxu0 0.0
      %1037 = vmatpush1.msra.mxu0 0.0
      %1038 = vmatprep.subr.mxu0 0.0
      %1039 = vmatpush1.msra.mxu0 0.0
      %1040 = vmatprep.subr.mxu0 0.0
      %1041 = vmatpush1.msra.mxu0 0.0
      %1042 = vmatprep.subr.mxu0 0.0
      %1043 = vmatpush1.msra.mxu0 0.0
      %1044 = vmatprep.subr.mxu0 0.0
      %1045 = vmatpush1.msra.mxu0 0.0
      %1046 = vmatprep.subr.mxu0 0.0
      %1047 = vmatpush1.msra.mxu0 0.0
      %1048 = vmatprep.subr.mxu0 0.0
      %1049 = vmatpush1.msra.mxu0 0.0
      %1050 = vmatprep.subr.mxu0 0.0
      %1051 = vmatpush1.msra.mxu0 0.0
      %1052 = vmatprep.subr.mxu0 0.0
      %1053 = vmatpush1.msra.mxu0 0.0
      %1054 = vmatprep.subr.mxu0 0.0
      %1055 = vmatpush1.msra.mxu0 0.0
      %1056 = vmatprep.subr.mxu0 0.0
      %1057 = vmatpush1.msra.mxu0 0.0
      %1058 = vmatprep.subr.mxu0 0.0
      %1059 = vmatpush1.msra.mxu0 0.0
      %1060 = vmatprep.subr.mxu0 0.0
      %1061 = vmatpush1.msra.mxu0 0.0
      %1062 = vmatprep.subr.mxu0 0.0
      %1063 = vmatpush1.msra.mxu0 0.0
      %1064 = vmatprep.subr.mxu0 0.0
      %1065 = vmatpush1.msra.mxu0 0.0
      %1066 = vmatprep.subr.mxu0 0.0
      %1067 = vmatpush1.msra.mxu0 0.0
      %1068 = vmatprep.subr.mxu0 0.0
      %1069 = vmatpush1.msra.mxu0 0.0
      %1070 = vmatprep.mubr.f32.mxu0 0.0
      %1071 = vmatmul.mubr.f32.gmra.mrb[0].mxu0 %v1002
      %v1072 = vpop.f32.mrb[0].mxu0
      %v1073 = vadd.f32 0.0, %v1072
      %v1074 = vpop.f32.mrb[0].mxu0
      %1075 = vmatprep.mubr.f32.mxu0 0.0
      %1076 = vmatmul.mubr.f32.gmra.mrb[0].mxu0 %v1004
      %v1077 = vpop.f32.mrb[0].mxu0
      %v1078 = vadd.f32 0.0, %v1077
      %v1079 = vpop.f32.mrb[0].mxu0
      %1080 = vdwg.mxu0
      %v1081 = vadd.f32 %v987, %v1073
      %v1082 = vadd.f32 %v988, %v1078
      %s1083 = scalar_lea.vmem %s1, 512
      %v1084 = vld [vmem:[%s1083] sm:$0xff]
      %v1085 = vld [vmem:[%s1083 + $0x8] sm:$0xff]
      %v1086 = vld [vmem:[%s1083 + $0x10] sm:$0xff]
      %v1087 = vld [vmem:[%s1083 + $0x18] sm:$0xff]
      %v1088 = vld [vmem:[%s1083 + $0x20] sm:$0xff]
      %v1089 = vld [vmem:[%s1083 + $0x28] sm:$0xff]
      %v1090 = vld [vmem:[%s1083 + $0x30] sm:$0xff]
      %v1091 = vld [vmem:[%s1083 + $0x38] sm:$0xff]
      %1092 = vrot.lane.b32.xlu0 %v905, 120
      %v1093 = vpop.permute.xlu0 %1092
      %1094 = vrot.lane.b32.xlu0 %v907, 120
      %v1095 = vpop.permute.xlu0 %1094
      %v1096 = vsel %vm355, %v1093, 0
      %v1098 = vsel %vm355, %v1095, 0
      %1100 = vmatprep.subr.mxu0 0.0
      %1101 = vmatpush1.msra.mxu0 %v1084
      %1102 = vmatprep.subr.mxu0 0.0
      %1103 = vmatpush1.msra.mxu0 %v1085
      %1104 = vmatprep.subr.mxu0 0.0
      %1105 = vmatpush1.msra.mxu0 %v1086
      %1106 = vmatprep.subr.mxu0 0.0
      %1107 = vmatpush1.msra.mxu0 %v1087
      %1108 = vmatprep.subr.mxu0 0.0
      %1109 = vmatpush1.msra.mxu0 %v1088
      %1110 = vmatprep.subr.mxu0 0.0
      %1111 = vmatpush1.msra.mxu0 %v1089
      %1112 = vmatprep.subr.mxu0 0.0
      %1113 = vmatpush1.msra.mxu0 %v1090
      %1114 = vmatprep.subr.mxu0 0.0
      %1115 = vmatpush1.msra.mxu0 %v1091
      %1116 = vmatprep.subr.mxu0 0.0
      %1117 = vmatpush1.msra.mxu0 0.0
      %1118 = vmatprep.subr.mxu0 0.0
      %1119 = vmatpush1.msra.mxu0 0.0
      %1120 = vmatprep.subr.mxu0 0.0
      %1121 = vmatpush1.msra.mxu0 0.0
      %1122 = vmatprep.subr.mxu0 0.0
      %1123 = vmatpush1.msra.mxu0 0.0
      %1124 = vmatprep.subr.mxu0 0.0
      %1125 = vmatpush1.msra.mxu0 0.0
      %1126 = vmatprep.subr.mxu0 0.0
      %1127 = vmatpush1.msra.mxu0 0.0
      %1128 = vmatprep.subr.mxu0 0.0
      %1129 = vmatpush1.msra.mxu0 0.0
      %1130 = vmatprep.subr.mxu0 0.0
      %1131 = vmatpush1.msra.mxu0 0.0
      %1132 = vmatprep.subr.mxu0 0.0
      %1133 = vmatpush1.msra.mxu0 0.0
      %1134 = vmatprep.subr.mxu0 0.0
      %1135 = vmatpush1.msra.mxu0 0.0
      %1136 = vmatprep.subr.mxu0 0.0
      %1137 = vmatpush1.msra.mxu0 0.0
      %1138 = vmatprep.subr.mxu0 0.0
      %1139 = vmatpush1.msra.mxu0 0.0
      %1140 = vmatprep.subr.mxu0 0.0
      %1141 = vmatpush1.msra.mxu0 0.0
      %1142 = vmatprep.subr.mxu0 0.0
      %1143 = vmatpush1.msra.mxu0 0.0
      %1144 = vmatprep.subr.mxu0 0.0
      %1145 = vmatpush1.msra.mxu0 0.0
      %1146 = vmatprep.subr.mxu0 0.0
      %1147 = vmatpush1.msra.mxu0 0.0
      %1148 = vmatprep.subr.mxu0 0.0
      %1149 = vmatpush1.msra.mxu0 0.0
      %1150 = vmatprep.subr.mxu0 0.0
      %1151 = vmatpush1.msra.mxu0 0.0
      %1152 = vmatprep.subr.mxu0 0.0
      %1153 = vmatpush1.msra.mxu0 0.0
      %1154 = vmatprep.subr.mxu0 0.0
      %1155 = vmatpush1.msra.mxu0 0.0
      %1156 = vmatprep.subr.mxu0 0.0
      %1157 = vmatpush1.msra.mxu0 0.0
      %1158 = vmatprep.subr.mxu0 0.0
      %1159 = vmatpush1.msra.mxu0 0.0
      %1160 = vmatprep.subr.mxu0 0.0
      %1161 = vmatpush1.msra.mxu0 0.0
      %1162 = vmatprep.subr.mxu0 0.0
      %1163 = vmatpush1.msra.mxu0 0.0
      %1164 = vmatprep.mubr.f32.mxu0 0.0
      %1165 = vmatmul.mubr.f32.gmra.mrb[0].mxu0 %v1096
      %v1166 = vpop.f32.mrb[0].mxu0
      %v1167 = vadd.f32 0.0, %v1166
      %v1168 = vpop.f32.mrb[0].mxu0
      %1169 = vmatprep.mubr.f32.mxu0 0.0
      %1170 = vmatmul.mubr.f32.gmra.mrb[0].mxu0 %v1098
      %v1171 = vpop.f32.mrb[0].mxu0
      %v1172 = vadd.f32 0.0, %v1171
      %v1173 = vpop.f32.mrb[0].mxu0
      %1174 = vdwg.mxu0
      %v1175 = vadd.f32 %v1081, %v1167
      %v1176 = vadd.f32 %v1082, %v1172
      %v1177 = vld [vmem:[%s2] sm:$0x1]
      %v1179 = vlaneseq
      %v1180 = vshrl.u32 %v1179, 7
      %v1181 = vsub.s32 0, %v1180
      %v1182 = vrot.slane %v1177, %v1181
      %v1184 = vadd.f32 %v1175, %v1182
      %v1185 = vadd.f32 %v1176, %v1182
      %v1186 = vmax.f32 %v1184, 0.0
      %v1187 = vmax.f32 %v1185, 0.0
      %v1188 = vld [vmem:[%s3] sm:$0xff]
      %v1189 = vld [vmem:[%s3 + $0x8] sm:$0xff]
      %v1190 = vld [vmem:[%s3 + $0x10] sm:$0xff]
      %v1191 = vld [vmem:[%s3 + $0x18] sm:$0xff]
      %v1192 = vld [vmem:[%s3 + $0x20] sm:$0xff]
      %v1193 = vld [vmem:[%s3 + $0x28] sm:$0xff]
      %v1194 = vld [vmem:[%s3 + $0x30] sm:$0xff]
      %v1195 = vld [vmem:[%s3 + $0x38] sm:$0xff]
      %v1196 = vld [vmem:[%s3 + $0x40] sm:$0xff]
      %v1197 = vld [vmem:[%s3 + $0x48] sm:$0xff]
      %v1198 = vld [vmem:[%s3 + $0x50] sm:$0xff]
      %v1199 = vld [vmem:[%s3 + $0x58] sm:$0xff]
      %v1200 = vld [vmem:[%s3 + $0x60] sm:$0xff]
      %v1201 = vld [vmem:[%s3 + $0x68] sm:$0xff]
      %v1202 = vld [vmem:[%s3 + $0x70] sm:$0xff]
      %v1203 = vld [vmem:[%s3 + $0x78] sm:$0xff]
      %v1204 = vld [vmem:[%s4] sm:$0x1]
      %v1206 = vlaneseq
      %v1207 = vshrl.u32 %v1206, 7
      %v1208 = vsub.s32 0, %v1207
      %v1209 = vrot.slane %v1204, %v1208
      %1211 = vmatprep.subr.mxu0 0.0
      %1212 = vmatpush1.msra.mxu0 %v1188
      %1213 = vmatprep.subr.mxu0 0.0
      %1214 = vmatpush1.msra.mxu0 %v1189
      %1215 = vmatprep.subr.mxu0 0.0
      %1216 = vmatpush1.msra.mxu0 %v1190
      %1217 = vmatprep.subr.mxu0 0.0
      %1218 = vmatpush1.msra.mxu0 %v1191
      %1219 = vmatprep.subr.mxu0 0.0
      %1220 = vmatpush1.msra.mxu0 %v1192
      %1221 = vmatprep.subr.mxu0 0.0
      %1222 = vmatpush1.msra.mxu0 %v1193
      %1223 = vmatprep.subr.mxu0 0.0
      %1224 = vmatpush1.msra.mxu0 %v1194
      %1225 = vmatprep.subr.mxu0 0.0
      %1226 = vmatpush1.msra.mxu0 %v1195
      %1227 = vmatprep.subr.mxu0 0.0
      %1228 = vmatpush1.msra.mxu0 %v1196
      %1229 = vmatprep.subr.mxu0 0.0
      %1230 = vmatpush1.msra.mxu0 %v1197
      %1231 = vmatprep.subr.mxu0 0.0
      %1232 = vmatpush1.msra.mxu0 %v1198
      %1233 = vmatprep.subr.mxu0 0.0
      %1234 = vmatpush1.msra.mxu0 %v1199
      %1235 = vmatprep.subr.mxu0 0.0
      %1236 = vmatpush1.msra.mxu0 %v1200
      %1237 = vmatprep.subr.mxu0 0.0
      %1238 = vmatpush1.msra.mxu0 %v1201
      %1239 = vmatprep.subr.mxu0 0.0
      %1240 = vmatpush1.msra.mxu0 %v1202
      %1241 = vmatprep.subr.mxu0 0.0
      %1242 = vmatpush1.msra.mxu0 %v1203
      %1243 = vmatprep.subr.mxu0 0.0
      %1244 = vmatpush1.msra.mxu0 0.0
      %1245 = vmatprep.subr.mxu0 0.0
      %1246 = vmatpush1.msra.mxu0 0.0
      %1247 = vmatprep.subr.mxu0 0.0
      %1248 = vmatpush1.msra.mxu0 0.0
      %1249 = vmatprep.subr.mxu0 0.0
      %1250 = vmatpush1.msra.mxu0 0.0
      %1251 = vmatprep.subr.mxu0 0.0
      %1252 = vmatpush1.msra.mxu0 0.0
      %1253 = vmatprep.subr.mxu0 0.0
      %1254 = vmatpush1.msra.mxu0 0.0
      %1255 = vmatprep.subr.mxu0 0.0
      %1256 = vmatpush1.msra.mxu0 0.0
      %1257 = vmatprep.subr.mxu0 0.0
      %1258 = vmatpush1.msra.mxu0 0.0
      %1259 = vmatprep.subr.mxu0 0.0
      %1260 = vmatpush1.msra.mxu0 0.0
      %1261 = vmatprep.subr.mxu0 0.0
      %1262 = vmatpush1.msra.mxu0 0.0
      %1263 = vmatprep.subr.mxu0 0.0
      %1264 = vmatpush1.msra.mxu0 0.0
      %1265 = vmatprep.subr.mxu0 0.0
      %1266 = vmatpush1.msra.mxu0 0.0
      %1267 = vmatprep.subr.mxu0 0.0
      %1268 = vmatpush1.msra.mxu0 0.0
      %1269 = vmatprep.subr.mxu0 0.0
      %1270 = vmatpush1.msra.mxu0 0.0
      %1271 = vmatprep.subr.mxu0 0.0
      %1272 = vmatpush1.msra.mxu0 0.0
      %1273 = vmatprep.subr.mxu0 0.0
      %1274 = vmatpush1.msra.mxu0 0.0
      %1275 = vmatprep.mubr.f32.mxu0 0.0
      %1276 = vmatmul.mubr.f32.gmra.mrb[0].mxu0 %v1186
      %v1277 = vpop.f32.mrb[0].mxu0
      %v1278 = vadd.f32 %v1209, %v1277
      %v1279 = vpop.f32.mrb[0].mxu0
      %1280 = vmatprep.mubr.f32.mxu0 0.0
      %1281 = vmatmul.mubr.f32.gmra.mrb[0].mxu0 %v1187
      %v1282 = vpop.f32.mrb[0].mxu0
      %v1283 = vadd.f32 %v1209, %v1282
      %v1284 = vpop.f32.mrb[0].mxu0
      %1285 = vdwg.mxu0
      %v1286 = vmax.f32 %v1278, 0.0
      %v1287 = vmax.f32 %v1283, 0.0
      %vm1288 = vcmask 130048
      %v1290 = vsel %vm1288, 1.0, 0
      %1292 = vmatprep.subr.mxu0 0.0
      %1293 = vmatpush1.msra.mxu0 %v1286
      %1294 = vmatprep.subr.mxu0 0.0
      %1295 = vmatpush1.msra.mxu0 %v1287
      %1296 = vmatprep.subr.mxu0 0.0
      %1297 = vmatpush1.msra.mxu0 0.0
      %1298 = vmatprep.subr.mxu0 0.0
      %1299 = vmatpush1.msra.mxu0 0.0
      %1300 = vmatprep.subr.mxu0 0.0
      %1301 = vmatpush1.msra.mxu0 0.0
      %1302 = vmatprep.subr.mxu0 0.0
      %1303 = vmatpush1.msra.mxu0 0.0
      %1304 = vmatprep.subr.mxu0 0.0
      %1305 = vmatpush1.msra.mxu0 0.0
      %1306 = vmatprep.subr.mxu0 0.0
      %1307 = vmatpush1.msra.mxu0 0.0
      %1308 = vmatprep.subr.mxu0 0.0
      %1309 = vmatpush1.msra.mxu0 0.0
      %1310 = vmatprep.subr.mxu0 0.0
      %1311 = vmatpush1.msra.mxu0 0.0
      %1312 = vmatprep.subr.mxu0 0.0
      %1313 = vmatpush1.msra.mxu0 0.0
      %1314 = vmatprep.subr.mxu0 0.0
      %1315 = vmatpush1.msra.mxu0 0.0
      %1316 = vmatprep.subr.mxu0 0.0
      %1317 = vmatpush1.msra.mxu0 0.0
      %1318 = vmatprep.subr.mxu0 0.0
      %1319 = vmatpush1.msra.mxu0 0.0
      %1320 = vmatprep.subr.mxu0 0.0
      %1321 = vmatpush1.msra.mxu0 0.0
      %1322 = vmatprep.subr.mxu0 0.0
      %1323 = vmatpush1.msra.mxu0 0.0
      %1324 = vmatprep.subr.mxu0 0.0
      %1325 = vmatpush1.msra.mxu0 0.0
      %1326 = vmatprep.subr.mxu0 0.0
      %1327 = vmatpush1.msra.mxu0 0.0
      %1328 = vmatprep.subr.mxu0 0.0
      %1329 = vmatpush1.msra.mxu0 0.0
      %1330 = vmatprep.subr.mxu0 0.0
      %1331 = vmatpush1.msra.mxu0 0.0
      %1332 = vmatprep.subr.mxu0 0.0
      %1333 = vmatpush1.msra.mxu0 0.0
      %1334 = vmatprep.subr.mxu0 0.0
      %1335 = vmatpush1.msra.mxu0 0.0
      %1336 = vmatprep.subr.mxu0 0.0
      %1337 = vmatpush1.msra.mxu0 0.0
      %1338 = vmatprep.subr.mxu0 0.0
      %1339 = vmatpush1.msra.mxu0 0.0
      %1340 = vmatprep.subr.mxu0 0.0
      %1341 = vmatpush1.msra.mxu0 0.0
      %1342 = vmatprep.subr.mxu0 0.0
      %1343 = vmatpush1.msra.mxu0 0.0
      %1344 = vmatprep.subr.mxu0 0.0
      %1345 = vmatpush1.msra.mxu0 0.0
      %1346 = vmatprep.subr.mxu0 0.0
      %1347 = vmatpush1.msra.mxu0 0.0
      %1348 = vmatprep.subr.mxu0 0.0
      %1349 = vmatpush1.msra.mxu0 0.0
      %1350 = vmatprep.subr.mxu0 0.0
      %1351 = vmatpush1.msra.mxu0 0.0
      %1352 = vmatprep.subr.mxu0 0.0
      %1353 = vmatpush1.msra.mxu0 0.0
      %1354 = vmatprep.subr.mxu0 0.0
      %1355 = vmatpush1.msra.mxu0 0.0
      %1356 = vmatprep.mubr.f32.mxu0 0.0
      %1357 = vmatmul.mubr.f32.gmra.mrb[0].mxu0 %v1290
      %v1358 = vpop.f32.mrb[0].mxu0
      %v1359 = vadd.f32 0.0, %v1358
      %v1360 = vpop.f32.mrb[0].mxu0
      %1361 = vdwg.mxu0
      %v1362 = vld [vmem:[%s5] sm:$0xff]
      %v1363 = vld [vmem:[%s5 + $0x8] sm:$0xff]
      %v1364 = vld [vmem:[%s5 + $0x10] sm:$0xff]
      %v1365 = vld [vmem:[%s5 + $0x18] sm:$0xff]
      %v1366 = vld [vmem:[%s5 + $0x20] sm:$0xff]
      %v1367 = vld [vmem:[%s5 + $0x28] sm:$0xff]
      %v1368 = vld [vmem:[%s5 + $0x30] sm:$0xff]
      %v1369 = vld [vmem:[%s5 + $0x38] sm:$0xff]
      %v1370 = vld [vmem:[%s5 + $0x40] sm:$0xff]
      %v1371 = vld [vmem:[%s5 + $0x48] sm:$0xff]
      %v1372 = vld [vmem:[%s5 + $0x50] sm:$0xff]
      %v1373 = vld [vmem:[%s5 + $0x58] sm:$0xff]
      %v1374 = vld [vmem:[%s5 + $0x60] sm:$0xff]
      %v1375 = vld [vmem:[%s5 + $0x68] sm:$0xff]
      %v1376 = vld [vmem:[%s5 + $0x70] sm:$0xff]
      %v1377 = vld [vmem:[%s5 + $0x78] sm:$0xff]
      %v1378 = vld [vmem:[%s6] sm:$0x1]
      %1379 = vmatprep.subr.mxu0 0.0
      %1380 = vmatpush1.msra.mxu0 %v1362
      %1381 = vmatprep.subr.mxu0 0.0
      %1382 = vmatpush1.msra.mxu0 %v1363
      %1383 = vmatprep.subr.mxu0 0.0
      %1384 = vmatpush1.msra.mxu0 %v1364
      %1385 = vmatprep.subr.mxu0 0.0
      %1386 = vmatpush1.msra.mxu0 %v1365
      %1387 = vmatprep.subr.mxu0 0.0
      %1388 = vmatpush1.msra.mxu0 %v1366
      %1389 = vmatprep.subr.mxu0 0.0
      %1390 = vmatpush1.msra.mxu0 %v1367
      %1391 = vmatprep.subr.mxu0 0.0
      %1392 = vmatpush1.msra.mxu0 %v1368
      %1393 = vmatprep.subr.mxu0 0.0
      %1394 = vmatpush1.msra.mxu0 %v1369
      %1395 = vmatprep.subr.mxu0 0.0
      %1396 = vmatpush1.msra.mxu0 %v1370
      %1397 = vmatprep.subr.mxu0 0.0
      %1398 = vmatpush1.msra.mxu0 %v1371
      %1399 = vmatprep.subr.mxu0 0.0
      %1400 = vmatpush1.msra.mxu0 %v1372
      %1401 = vmatprep.subr.mxu0 0.0
      %1402 = vmatpush1.msra.mxu0 %v1373
      %1403 = vmatprep.subr.mxu0 0.0
      %1404 = vmatpush1.msra.mxu0 %v1374
      %1405 = vmatprep.subr.mxu0 0.0
      %1406 = vmatpush1.msra.mxu0 %v1375
      %1407 = vmatprep.subr.mxu0 0.0
      %1408 = vmatpush1.msra.mxu0 %v1376
      %1409 = vmatprep.subr.mxu0 0.0
      %1410 = vmatpush1.msra.mxu0 %v1377
      %1411 = vmatprep.subr.mxu0 0.0
      %1412 = vmatpush1.msra.mxu0 0.0
      %1413 = vmatprep.subr.mxu0 0.0
      %1414 = vmatpush1.msra.mxu0 0.0
      %1415 = vmatprep.subr.mxu0 0.0
      %1416 = vmatpush1.msra.mxu0 0.0
      %1417 = vmatprep.subr.mxu0 0.0
      %1418 = vmatpush1.msra.mxu0 0.0
      %1419 = vmatprep.subr.mxu0 0.0
      %1420 = vmatpush1.msra.mxu0 0.0
      %1421 = vmatprep.subr.mxu0 0.0
      %1422 = vmatpush1.msra.mxu0 0.0
      %1423 = vmatprep.subr.mxu0 0.0
      %1424 = vmatpush1.msra.mxu0 0.0
      %1425 = vmatprep.subr.mxu0 0.0
      %1426 = vmatpush1.msra.mxu0 0.0
      %1427 = vmatprep.subr.mxu0 0.0
      %1428 = vmatpush1.msra.mxu0 0.0
      %1429 = vmatprep.subr.mxu0 0.0
      %1430 = vmatpush1.msra.mxu0 0.0
      %1431 = vmatprep.subr.mxu0 0.0
      %1432 = vmatpush1.msra.mxu0 0.0
      %1433 = vmatprep.subr.mxu0 0.0
      %1434 = vmatpush1.msra.mxu0 0.0
      %1435 = vmatprep.subr.mxu0 0.0
      %1436 = vmatpush1.msra.mxu0 0.0
      %1437 = vmatprep.subr.mxu0 0.0
      %1438 = vmatpush1.msra.mxu0 0.0
      %1439 = vmatprep.subr.mxu0 0.0
      %1440 = vmatpush1.msra.mxu0 0.0
      %1441 = vmatprep.subr.mxu0 0.0
      %1442 = vmatpush1.msra.mxu0 0.0
      %1443 = vmatprep.mubr.f32.mxu0 0.0
      %1444 = vmatmul.mubr.f32.gmra.mrb[0].mxu0 %v1359
      %v1445 = vpop.f32.mrb[0].mxu0
      %v1446 = vadd.f32 %v1378, %v1445
      %v1447 = vpop.f32.mrb[0].mxu0
      %1448 = vdwg.mxu0
      %v1449 = vmax.f32 %v1446, 0.0
      %v1450 = vld [vmem:[%s7] sm:$0xff]
      %v1451 = vld [vmem:[%s7 + $0x8] sm:$0xff]
      %v1452 = vld [vmem:[%s7 + $0x10] sm:$0xff]
      %v1453 = vld [vmem:[%s7 + $0x18] sm:$0xff]
      %v1454 = vld [vmem:[%s8] sm:$0x1]
      %vm1455 = vcmask 261120
      %v1457 = vsel %vm1455, %v1449, 0
      %1459 = vmatprep.subr.mxu0 0.0
      %1460 = vmatpush1.msra.mxu0 %v1450
      %1461 = vmatprep.subr.mxu0 0.0
      %1462 = vmatpush1.msra.mxu0 %v1451
      %1463 = vmatprep.subr.mxu0 0.0
      %1464 = vmatpush1.msra.mxu0 %v1452
      %1465 = vmatprep.subr.mxu0 0.0
      %1466 = vmatpush1.msra.mxu0 %v1453
      %1467 = vmatprep.subr.mxu0 0.0
      %1468 = vmatpush1.msra.mxu0 0.0
      %1469 = vmatprep.subr.mxu0 0.0
      %1470 = vmatpush1.msra.mxu0 0.0
      %1471 = vmatprep.subr.mxu0 0.0
      %1472 = vmatpush1.msra.mxu0 0.0
      %1473 = vmatprep.subr.mxu0 0.0
      %1474 = vmatpush1.msra.mxu0 0.0
      %1475 = vmatprep.subr.mxu0 0.0
      %1476 = vmatpush1.msra.mxu0 0.0
      %1477 = vmatprep.subr.mxu0 0.0
      %1478 = vmatpush1.msra.mxu0 0.0
      %1479 = vmatprep.subr.mxu0 0.0
      %1480 = vmatpush1.msra.mxu0 0.0
      %1481 = vmatprep.subr.mxu0 0.0
      %1482 = vmatpush1.msra.mxu0 0.0
      %1483 = vmatprep.subr.mxu0 0.0
      %1484 = vmatpush1.msra.mxu0 0.0
      %1485 = vmatprep.subr.mxu0 0.0
      %1486 = vmatpush1.msra.mxu0 0.0
      %1487 = vmatprep.subr.mxu0 0.0
      %1488 = vmatpush1.msra.mxu0 0.0
      %1489 = vmatprep.subr.mxu0 0.0
      %1490 = vmatpush1.msra.mxu0 0.0
      %1491 = vmatprep.subr.mxu0 0.0
      %1492 = vmatpush1.msra.mxu0 0.0
      %1493 = vmatprep.subr.mxu0 0.0
      %1494 = vmatpush1.msra.mxu0 0.0
      %1495 = vmatprep.subr.mxu0 0.0
      %1496 = vmatpush1.msra.mxu0 0.0
      %1497 = vmatprep.subr.mxu0 0.0
      %1498 = vmatpush1.msra.mxu0 0.0
      %1499 = vmatprep.subr.mxu0 0.0
      %1500 = vmatpush1.msra.mxu0 0.0
      %1501 = vmatprep.subr.mxu0 0.0
      %1502 = vmatpush1.msra.mxu0 0.0
      %1503 = vmatprep.subr.mxu0 0.0
      %1504 = vmatpush1.msra.mxu0 0.0
      %1505 = vmatprep.subr.mxu0 0.0
      %1506 = vmatpush1.msra.mxu0 0.0
      %1507 = vmatprep.subr.mxu0 0.0
      %1508 = vmatpush1.msra.mxu0 0.0
      %1509 = vmatprep.subr.mxu0 0.0
      %1510 = vmatpush1.msra.mxu0 0.0
      %1511 = vmatprep.subr.mxu0 0.0
      %1512 = vmatpush1.msra.mxu0 0.0
      %1513 = vmatprep.subr.mxu0 0.0
      %1514 = vmatpush1.msra.mxu0 0.0
      %1515 = vmatprep.subr.mxu0 0.0
      %1516 = vmatpush1.msra.mxu0 0.0
      %1517 = vmatprep.subr.mxu0 0.0
      %1518 = vmatpush1.msra.mxu0 0.0
      %1519 = vmatprep.subr.mxu0 0.0
      %1520 = vmatpush1.msra.mxu0 0.0
      %1521 = vmatprep.subr.mxu0 0.0
      %1522 = vmatpush1.msra.mxu0 0.0
      %1523 = vmatprep.mubr.f32.mxu0 0.0
      %1524 = vmatmul.mubr.f32.gmra.mrb[0].mxu0 %v1457
      %v1525 = vpop.f32.mrb[0].mxu0
      %v1526 = vadd.f32 %v1454, %v1525
      %v1527 = vpop.f32.mrb[0].mxu0
      %1528 = vdwg.mxu0
      %1529 = vst [vmem:[%s328] sm:$0x1] %v1526
      %p1530 = scmp.lt.s32.totalorder %s20, 1
      %s1531 = scalar_select %p1530, %s20, 1
      %s1532 = scalar_lea.vmem %s9, %s1531
      // Predicated region
      $region57: #{deeplabv3_forward.1} parent=55 // pred_check
        %p1533 = pneg %p232
      $region58: #{deeplabv3_forward.1} parent=55 // pred_check_branch
        %1535 = sbr.rel (%p1533) target = $region60
      $region59: #{deeplabv3_forward.1} parent=55 // pred_region
        _
      $region60: #{deeplabv3_forward.1} parent=55 // pred_fallthru
        _
    $region56: #{deeplabv3_forward.1} parent=5 // pred_fallthru
      _
    %p1536 = scmp.le.s32.totalorder 2, %s15
    // Predicated region
    $region61: #{deeplabv3_forward.1} parent=5 // pred_check
      %p1537 = pneg %p1536
    $region62: #{deeplabv3_forward.1} parent=5 // pred_check_branch
      %1539 = sbr.rel (%p1537) target = $region64
    $region63: #{deeplabv3_forward.1} parent=5 // pred_region
      %s1540 = ssub.s32 %s15, 2
      // Predicated region
      $region65: #{deeplabv3_forward.1} parent=63 // pred_check
        %p1541 = pneg %p238
      $region66: #{deeplabv3_forward.1} parent=63 // pred_check_branch
        %1543 = sbr.rel (%p1541) target = $region68
      $region67: #{deeplabv3_forward.1} parent=63 // pred_region
        %p1544 = scmp.lt.s32.totalorder %s21, 1
        %s1545 = scalar_select %p1544, %s21, 1
        %s1546 = scalar_lea.vmem %s9, %s1545
      $region68: #{deeplabv3_forward.1} parent=63 // pred_fallthru
        _
    $region64: #{deeplabv3_forward.1} parent=5 // pred_fallthru
      _
  $region6: #{deeplabv3_forward.1} parent=0 // loop_footer
    %s19 = sadd.s32 1, %s15
  $region7: #{deeplabv3_forward.1} parent=0 // loop_footer_branch
    %14 = sbr.rel target = $region3
  $region8: #{deeplabv3_forward.1} parent=0 // loop_exit
    _

</llo_original>
